<compile_context>
chip_gen: v6e
topology: v6e:2x2x1
jax: 0.10.0
libtpu: 0.0.40
codegen_flags: <defaults>
</compile_context>

<pallas_src>
import jax
import jax.numpy as jnp
from jax.experimental import pallas as pl
from jax.experimental.pallas import tpu as pltpu

_LANES = 128
_MIN_BLOCK = 1024                     # keeps the (block_m//128, 128) out tile sublane-aligned
_VMEM_X_BUDGET = 40 * 1024 * 1024     # budget for the double-buffered, lane-padded x stream


def _round_up(n, m):
    return ((n + m - 1) // m) * m


def mlp_kernel(x_ref, w1_ref, b1_ref, w2_ref, b2_ref, w3_ref, b3_ref, o_ref):
    # fc1: MXU matmul (K=30) with f32 accumulation; bias + ReLU on the VPU.
    h1 = jnp.dot(x_ref[...], w1_ref[...], preferred_element_type=jnp.float32)
    h1 = jnp.maximum(h1 + b1_ref[...], 0.0)

    # fc2: f32 matmul (K=30, N=15) -- compute is nowhere near the bottleneck.
    h2 = jnp.dot(h1, w2_ref[...], preferred_element_type=jnp.float32)
    h2 = jnp.maximum(h2 + b2_ref[...], 0.0)

    # fc3 (K=15, N=1): VPU multiply + lane reduction instead of an MXU matmul.
    # The (block_m, 15) product is reshaped by splitting only its leading dim so the
    # reduction lands directly as a lane-dense (block_m // 128, 128) output tile
    # (unmasked vst instead of a masked (block_m, 1) column).
    g, lanes = o_ref.shape
    prod = h2 * w3_ref[...]                           # (block_m, 15)
    prod = prod.reshape(g, lanes, prod.shape[-1])     # (g, 128, 15)
    logits = jnp.sum(prod, axis=-1) + b3_ref[...]     # (g, 128)
    o_ref[...] = jax.nn.sigmoid(logits).astype(o_ref.dtype)


def _select_block_m(B, requested, x_itemsize, out_itemsize):
    """Pick the batch tile with lane-padding-aware VMEM accounting."""
    b_lanes = _round_up(B, _LANES)
    # Per batch row of VMEM: x double-buffered and lane-padded 30->128 lanes, plus the
    # double-buffered lane-dense output tile.
    per_row = 2 * _LANES * x_itemsize + 2 * out_itemsize
    vmem_cap = max(_MIN_BLOCK, (_VMEM_X_BUDGET // per_row) // _MIN_BLOCK * _MIN_BLOCK)
    bm = max(_MIN_BLOCK, min(int(requested), vmem_cap))
    bm = (bm // _MIN_BLOCK) * _MIN_BLOCK
    if b_lanes <= bm:
        if b_lanes >= 2 * _MIN_BLOCK:
            # Keep >= 2 grid steps so both v7x TensorCores get work under
            # dimension_semantics=("parallel",).
            bm = _round_up((b_lanes + 1) // 2, _MIN_BLOCK)
        else:
            # Tiny batch: one (possibly partial) block covering the whole padded batch.
            bm = b_lanes
    return bm


def ann_forward(x, params, *, block_m=32768, out_dtype=jnp.float32):
    """x: (B, 30) in f32 or bf16. params: w1,b1,w2,b2,w3,b3 with weights stored (in, out)."""
    B, D_in = x.shape
    x_dt = x.dtype

    # Cast only the tiny weights to match x's streamed dtype -- never touch x in HBM.
    w1 = params["w1"].astype(x_dt)                       # (30, 30)
    b1 = params["b1"].astype(jnp.float32)                # (1, 30)
    w2 = params["w2"].astype(jnp.float32)                # (30, 15)
    b2 = params["b2"].astype(jnp.float32)                # (1, 15)
    w3_row = params["w3"].reshape(1, -1).astype(jnp.float32)   # (1, 15) row for the VPU path
    b3 = params["b3"].astype(jnp.float32)                # (1, 1)

    x_itemsize = jnp.dtype(x_dt).itemsize
    out_itemsize = jnp.dtype(out_dtype).itemsize

    block_m = _select_block_m(B, block_m, x_itemsize, out_itemsize)
    num_blocks = pl.cdiv(B, block_m)          # ragged last block handled by Pallas masking
    g = block_m // _LANES                     # sublane rows of each lane-dense output tile

    # Triple-buffer the x stream only when tiles are small and numerous; at multi-MB
    # tiles default double buffering is the right trade (VMEM goes to block_m instead).
    x_pipeline = pl.Buffered(3) if (num_blocks > 2 and block_m < 8192) else None
    n_x_bufs = 3 if x_pipeline is not None else 2

    # Lane-padding-aware VMEM estimate (+1 MiB slack for weights / internal scratch).
    vmem_need = (n_x_bufs * block_m * _LANES * x_itemsize
                 + 2 * block_m * out_itemsize
                 + (1 << 20))
    compiler_kwargs = dict(dimension_semantics=("parallel",))
    if vmem_need > (16 << 20):   # above v5e's scoped-VMEM default -> set an explicit limit
        compiler_kwargs["vmem_limit_bytes"] = int(min(vmem_need + (8 << 20), 56 << 20))

    weight_bytes = 4 * (30 * 30 + 30 + 30 * 15 + 15 + 15 + 1)
    cost = pl.CostEstimate(
        flops=2 * B * (D_in * 30 + 30 * 15 + 15 * 1),
        transcendentals=B,
        bytes_accessed=B * (D_in * x_itemsize + out_itemsize) + weight_bytes,
    )

    out = pl.pallas_call(
        mlp_kernel,
        out_shape=jax.ShapeDtypeStruct((num_blocks * g, _LANES), out_dtype),
        grid_spec=pltpu.PrefetchScalarGridSpec(
            num_scalar_prefetch=0,
            grid=(num_blocks,),
            in_specs=[
                pl.BlockSpec((block_m, D_in), lambda i: (i, 0),
                             pipeline_mode=x_pipeline),        # x tile (only per-step DMA)
                pl.BlockSpec(w1.shape, lambda i: (0, 0)),      # w1 (30, 30)
                pl.BlockSpec(b1.shape, lambda i: (0, 0)),      # b1 (1, 30)
                pl.BlockSpec(w2.shape, lambda i: (0, 0)),      # w2 (30, 15)
                pl.BlockSpec(b2.shape, lambda i: (0, 0)),      # b2 (1, 15)
                pl.BlockSpec(w3_row.shape, lambda i: (0, 0)),  # w3 (1, 15)
                pl.BlockSpec(b3.shape, lambda i: (0, 0)),      # b3 (1, 1)
            ],
            out_specs=pl.BlockSpec((g, _LANES), lambda i: (i, 0)),
        ),
        compiler_params=pltpu.CompilerParams(**compiler_kwargs),
        cost_estimate=cost,
    )(x, w1, b1, w2, b2, w3_row, b3)

    # Lane-dense (rows, 128) slab flattens row-major to exactly batch order; rows past B
    # (from the ragged last block) contain garbage and are sliced away here.
    return out.reshape(num_blocks * block_m, 1)[:B]


def init_params(key):
    """Deterministic init matching nn.Linear shapes (weights kept as (in, out))."""
    def linear_init(k, fan_in, fan_out):
        kw, kb = jax.random.split(k)
        bound = 1.0 / jnp.sqrt(fan_in)
        # torch.nn.Linear default: U(-1/sqrt(fan_in), 1/sqrt(fan_in))
        w = jax.random.uniform(kw, (fan_in, fan_out), jnp.float32, -bound, bound)
        b = jax.random.uniform(kb, (1, fan_out), jnp.float32, -bound, bound)
        return w, b

    k1, k2, k3 = jax.random.split(key, 3)
    w1, b1 = linear_init(k1, 30, 30)
    w2, b2 = linear_init(k2, 30, 15)
    w3, b3 = linear_init(k3, 15, 1)
    return {"w1": w1, "b1": b1, "w2": w2, "b2": b2, "w3": w3, "b3": b3}


def ann_reference(x, p):
    # Pure f32 reference (the kernel now streams and computes x in its native f32).
    hi = jax.lax.Precision.HIGHEST
    xf = x.astype(jnp.float32)
    h1 = jnp.maximum(jnp.dot(xf, p["w1"], precision=hi) + p["b1"], 0.0)
    h2 = jnp.maximum(jnp.dot(h1, p["w2"], precision=hi) + p["b2"], 0.0)
    return jax.nn.sigmoid(jnp.dot(h2, p["w3"], precision=hi) + p["b3"])


if __name__ == "__main__":
    key = jax.random.PRNGKey(0)
    kx, kp = jax.random.split(key)

    # Small test batch; deliberately NOT a multiple of 128 to exercise the ragged
    # (partial) x block + lane-dense output slice path.
    B = 300
    x = jax.random.normal(kx, (B, 30), dtype=jnp.float32)
    params = init_params(kp)

    out = jax.block_until_ready(ann_forward(x, params))
    ref = ann_reference(x, params)

    assert out.shape == (B, 1), out.shape
    max_err = float(jnp.max(jnp.abs(out.astype(jnp.float32) - ref)))
    assert jnp.allclose(out.astype(jnp.float32), ref, atol=5e-3, rtol=5e-3), max_err

    print("KERNEL_OK")
</pallas_src>

<mosaic_0001>
module attributes {stable_mosaic.version = 11 : i64} {
  func.func @mlp_kernel(%arg0: i32, %arg1: memref<384x30xf32, #tpu.memory_space<vmem>>, %arg2: memref<30x30xf32, #tpu.memory_space<vmem>>, %arg3: memref<1x30xf32, #tpu.memory_space<vmem>>, %arg4: memref<30x15xf32, #tpu.memory_space<vmem>>, %arg5: memref<1x15xf32, #tpu.memory_space<vmem>>, %arg6: memref<1x15xf32, #tpu.memory_space<vmem>>, %arg7: memref<1x1xf32, #tpu.memory_space<vmem>>, %arg8: memref<3x128xf32, #tpu.memory_space<vmem>>) attributes {dimension_semantics = [#tpu.dimension_semantics<parallel>], iteration_bounds = array<i64: 1>, scalar_prefetch = 0 : i64, scratch_operands = 0 : i64, tpu.core_type = #tpu.core_type<tc>, window_params = [{transform_indices = @transform_0, window_bounds = array<i64: 384, 30>}, {pipeline_mode = #tpu.pipeline_mode<synchronous>, transform_indices = @transform_1, window_bounds = array<i64: 30, 30>}, {pipeline_mode = #tpu.pipeline_mode<synchronous>, transform_indices = @transform_2, window_bounds = array<i64: 1, 30>}, {pipeline_mode = #tpu.pipeline_mode<synchronous>, transform_indices = @transform_3, window_bounds = array<i64: 30, 15>}, {pipeline_mode = #tpu.pipeline_mode<synchronous>, transform_indices = @transform_4, window_bounds = array<i64: 1, 15>}, {pipeline_mode = #tpu.pipeline_mode<synchronous>, transform_indices = @transform_5, window_bounds = array<i64: 1, 15>}, {pipeline_mode = #tpu.pipeline_mode<synchronous>, transform_indices = @transform_6, window_bounds = array<i64: 1, 1>}, {transform_indices = @transform_7, window_bounds = array<i64: 3, 128>}]} {
    %c0 = arith.constant 0 : index
    %c0_0 = arith.constant 0 : index
    %0 = vector.load %arg1[%c0, %c0_0] : memref<384x30xf32, #tpu.memory_space<vmem>>, vector<384x30xf32>
    %c0_1 = arith.constant 0 : index
    %c0_2 = arith.constant 0 : index
    %1 = vector.load %arg2[%c0_1, %c0_2] : memref<30x30xf32, #tpu.memory_space<vmem>>, vector<30x30xf32>
    %cst = arith.constant dense<0.000000e+00> : vector<384x30xf32>
    %2 = tpu.matmul %0, %1, %cst {dimension_numbers = #tpu.dot_dimension_numbers<[1], [0], [0], [1], [0, 0, 1, 1], [], []>} : vector<384x30xf32>, vector<30x30xf32>, vector<384x30xf32> -> vector<384x30xf32>
    %c0_3 = arith.constant 0 : index
    %c0_4 = arith.constant 0 : index
    %3 = vector.load %arg3[%c0_3, %c0_4] : memref<1x30xf32, #tpu.memory_space<vmem>>, vector<1x30xf32>
    %4 = vector.broadcast %3 : vector<1x30xf32> to vector<384x30xf32>
    %5 = arith.addf %2, %4 : vector<384x30xf32>
    %cst_5 = arith.constant 0.000000e+00 : f32
    %6 = vector.broadcast %cst_5 : f32 to vector<384x30xf32>
    %7 = arith.maximumf %5, %6 : vector<384x30xf32>
    %c0_6 = arith.constant 0 : index
    %c0_7 = arith.constant 0 : index
    %8 = vector.load %arg4[%c0_6, %c0_7] : memref<30x15xf32, #tpu.memory_space<vmem>>, vector<30x15xf32>
    %cst_8 = arith.constant dense<0.000000e+00> : vector<384x15xf32>
    %9 = tpu.matmul %7, %8, %cst_8 {dimension_numbers = #tpu.dot_dimension_numbers<[1], [0], [0], [1], [0, 0, 1, 1], [], []>} : vector<384x30xf32>, vector<30x15xf32>, vector<384x15xf32> -> vector<384x15xf32>
    %c0_9 = arith.constant 0 : index
    %c0_10 = arith.constant 0 : index
    %10 = vector.load %arg5[%c0_9, %c0_10] : memref<1x15xf32, #tpu.memory_space<vmem>>, vector<1x15xf32>
    %11 = vector.broadcast %10 : vector<1x15xf32> to vector<384x15xf32>
    %12 = arith.addf %9, %11 : vector<384x15xf32>
    %cst_11 = arith.constant 0.000000e+00 : f32
    %13 = vector.broadcast %cst_11 : f32 to vector<384x15xf32>
    %14 = arith.maximumf %12, %13 : vector<384x15xf32>
    %c0_12 = arith.constant 0 : index
    %c0_13 = arith.constant 0 : index
    %15 = vector.load %arg6[%c0_12, %c0_13] : memref<1x15xf32, #tpu.memory_space<vmem>>, vector<1x15xf32>
    %16 = vector.broadcast %15 : vector<1x15xf32> to vector<384x15xf32>
    %17 = arith.mulf %14, %16 : vector<384x15xf32>
    %18 = vector.shape_cast %17 : vector<384x15xf32> to vector<3x128x15xf32>
    %cst_14 = arith.constant dense<0.000000e+00> : vector<3x128xf32>
    %19 = vector.multi_reduction <add>, %18, %cst_14 [2] : vector<3x128x15xf32> to vector<3x128xf32>
    %c0_15 = arith.constant 0 : index
    %c0_16 = arith.constant 0 : index
    %20 = vector.load %arg7[%c0_15, %c0_16] : memref<1x1xf32, #tpu.memory_space<vmem>>, vector<1x1xf32>
    %21 = vector.broadcast %20 : vector<1x1xf32> to vector<3x128xf32>
    %22 = arith.addf %19, %21 : vector<3x128xf32>
    %23 = arith.negf %22 : vector<3x128xf32>
    %24 = math.exp %23 : vector<3x128xf32>
    %cst_17 = arith.constant 1.000000e+00 : f32
    %25 = vector.broadcast %cst_17 : f32 to vector<3x128xf32>
    %26 = arith.addf %25, %24 : vector<3x128xf32>
    %27 = arith.divf %25, %26 : vector<3x128xf32>
    %c0_18 = arith.constant 0 : index
    %c0_19 = arith.constant 0 : index
    %28 = vector.load %arg8[%c0_18, %c0_19] : memref<3x128xf32, #tpu.memory_space<vmem>>, vector<3x128xf32>
    tpu.vector_store %arg8[%c0_18, %c0_19], %27 {strides = array<i32>} : memref<3x128xf32, #tpu.memory_space<vmem>>, vector<3x128xf32>,
    return
  }
  func.func @transform_0(%arg0: i32) -> (i32, i32) {
    %c0_i32 = arith.constant 0 : i32
    %c0_i32_0 = arith.constant 0 : i32
    return %arg0, %c0_i32 : i32, i32
  }
  func.func @transform_1(%arg0: i32) -> (i32, i32) {
    %c0_i32 = arith.constant 0 : i32
    %c0_i32_0 = arith.constant 0 : i32
    %c0_i32_1 = arith.constant 0 : i32
    return %c0_i32, %c0_i32_0 : i32, i32
  }
  func.func @transform_2(%arg0: i32) -> (i32, i32) {
    %c0_i32 = arith.constant 0 : i32
    %c0_i32_0 = arith.constant 0 : i32
    %c0_i32_1 = arith.constant 0 : i32
    return %c0_i32, %c0_i32_0 : i32, i32
  }
  func.func @transform_3(%arg0: i32) -> (i32, i32) {
    %c0_i32 = arith.constant 0 : i32
    %c0_i32_0 = arith.constant 0 : i32
    %c0_i32_1 = arith.constant 0 : i32
    return %c0_i32, %c0_i32_0 : i32, i32
  }
  func.func @transform_4(%arg0: i32) -> (i32, i32) {
    %c0_i32 = arith.constant 0 : i32
    %c0_i32_0 = arith.constant 0 : i32
    %c0_i32_1 = arith.constant 0 : i32
    return %c0_i32, %c0_i32_0 : i32, i32
  }
  func.func @transform_5(%arg0: i32) -> (i32, i32) {
    %c0_i32 = arith.constant 0 : i32
    %c0_i32_0 = arith.constant 0 : i32
    %c0_i32_1 = arith.constant 0 : i32
    return %c0_i32, %c0_i32_0 : i32, i32
  }
  func.func @transform_6(%arg0: i32) -> (i32, i32) {
    %c0_i32 = arith.constant 0 : i32
    %c0_i32_0 = arith.constant 0 : i32
    %c0_i32_1 = arith.constant 0 : i32
    return %c0_i32, %c0_i32_0 : i32, i32
  }
  func.func @transform_7(%arg0: i32) -> (i32, i32) {
    %c0_i32 = arith.constant 0 : i32
    %c0_i32_0 = arith.constant 0 : i32
    return %arg0, %c0_i32 : i32, i32
  }
}

</mosaic_0001>

<llo_original>
// kernel: tpu_custom_call.1
$region0: #{tpu_custom_call.1}
  #allocation0 [shape = 'u32[]', space=smem, size = 0x4, offset = 0x4, fixed_abs, tag = 'smem constant byte address 0x4 - core index']
  #allocation1 [shape = 'u32[144,128]{1,0:T(1,128)}', space=vmem, size = 0x12000, scoped, tag = 'internal scratch']
  #allocation2 [shape = 'f32[1,1]{1,0:T(1,128)S(1)}', space=vmem, size = 0x200, scoped, tag = 'scoped memory for tpu_custom_call.1']
  %s0 = inlined_call_operand.vmem [shape: f32[300,30], index: 0, kind: input, shape index: {}]
  %s1 = inlined_call_operand.vmem [shape: f32[30,30], index: 1, kind: input, shape index: {}]
  %s2 = inlined_call_operand.vmem [shape: f32[1,30], index: 2, kind: input, shape index: {}]
  %s3 = inlined_call_operand.vmem [shape: f32[30,15], index: 3, kind: input, shape index: {}]
  %s4 = inlined_call_operand.vmem [shape: f32[1,15], index: 4, kind: input, shape index: {}]
  %s5 = inlined_call_operand.vmem [shape: f32[1,15], index: 5, kind: input, shape index: {}]
  %s6 = inlined_call_operand.<no memory space> [shape: f32[1,1], index: 6, kind: input, shape index: {}]
  %s7 = inlined_call_operand.hbm [shape: f32[3,128], index: 7, kind: output, shape index: {}]
  %s8 = sld [smem:[#allocation0]]
  $region38: #{tpu_custom_call.1} parent=0
    _
  %s10 = ssub.s32 1, %s8
  %s11 = scalar_select 0, %s10, %s8
  %v12 = vstv %s6
  %13 = vst [vmem:[#allocation2] sm:$0x1] %v12
  $region1: #{tpu_custom_call.1} parent=0
    #allocation3 [shape = 'u8[2048]{0}', space=vmem, size = 0x800, scoped, tag = 'output window, operand 0, single buffered']
    #allocation4 [shape = 's32[1]{0}', space=sflag, size = 0x4, scoped, tag = 'scoped memory for tpu_custom_call.1']
    %14 = vsyncpa [#allocation4], 0
    // Predicated region
    $region2: #{tpu_custom_call.1} parent=1 // pred_check
      _
    $region3: #{tpu_custom_call.1} parent=1 // pred_check_branch
      %16 = sbr.rel (0) target = $region5
    $region4: #{tpu_custom_call.1} parent=1 // pred_region
      _
    $region5: #{tpu_custom_call.1} parent=1 // pred_fallthru
      _
    // Predicated region
    $region6: #{tpu_custom_call.1} parent=1 // pred_check
      _
    $region7: #{tpu_custom_call.1} parent=1 // pred_check_branch
      %18 = sbr.rel (0) target = $region9
    $region8: #{tpu_custom_call.1} parent=1 // pred_region
      _
    $region9: #{tpu_custom_call.1} parent=1 // pred_fallthru
      _
    // Predicated region
    $region10: #{tpu_custom_call.1} parent=1 // pred_check
      _
    $region11: #{tpu_custom_call.1} parent=1 // pred_check_branch
      %20 = sbr.rel (0) target = $region13
    $region12: #{tpu_custom_call.1} parent=1 // pred_region
      _
    $region13: #{tpu_custom_call.1} parent=1 // pred_fallthru
      _
    // Predicated region
    $region14: #{tpu_custom_call.1} parent=1 // pred_check
      _
    $region15: #{tpu_custom_call.1} parent=1 // pred_check_branch
      %22 = sbr.rel (0) target = $region17
    $region16: #{tpu_custom_call.1} parent=1 // pred_region
      _
    $region17: #{tpu_custom_call.1} parent=1 // pred_fallthru
      _
    // Predicated region
    $region18: #{tpu_custom_call.1} parent=1 // pred_check
      _
    $region19: #{tpu_custom_call.1} parent=1 // pred_check_branch
      %24 = sbr.rel (0) target = $region21
    $region20: #{tpu_custom_call.1} parent=1 // pred_region
      _
    $region21: #{tpu_custom_call.1} parent=1 // pred_fallthru
      _
    // Predicated region
    $region22: #{tpu_custom_call.1} parent=1 // pred_check
      _
    $region23: #{tpu_custom_call.1} parent=1 // pred_check_branch
      %26 = sbr.rel (0) target = $region25
    $region24: #{tpu_custom_call.1} parent=1 // pred_region
      _
    $region25: #{tpu_custom_call.1} parent=1 // pred_fallthru
      _
    // Predicated region
    $region26: #{tpu_custom_call.1} parent=1 // pred_check
      _
    $region27: #{tpu_custom_call.1} parent=1 // pred_check_branch
      %28 = sbr.rel (0) target = $region29
    $region28: #{tpu_custom_call.1} parent=1 // pred_region
      _
    $region29: #{tpu_custom_call.1} parent=1 // pred_fallthru
      _
    %v29 = vld [vmem:[%s0] sm:$0xff]
    %v30 = vld [vmem:[%s0 + $0x8] sm:$0xff]
    %v31 = vld [vmem:[%s0 + $0x10] sm:$0xff]
    %v32 = vld [vmem:[%s0 + $0x18] sm:$0xff]
    %v33 = vld [vmem:[%s0 + $0x20] sm:$0xff]
    %v34 = vld [vmem:[%s0 + $0x28] sm:$0xff]
    %v35 = vld [vmem:[%s0 + $0x30] sm:$0xff]
    %v36 = vld [vmem:[%s0 + $0x38] sm:$0xff]
    %v37 = vld [vmem:[%s0 + $0x40] sm:$0xff]
    %v38 = vld [vmem:[%s0 + $0x48] sm:$0xff]
    %v39 = vld [vmem:[%s0 + $0x50] sm:$0xff]
    %v40 = vld [vmem:[%s0 + $0x58] sm:$0xff]
    %v41 = vld [vmem:[%s0 + $0x60] sm:$0xff]
    %v42 = vld [vmem:[%s0 + $0x68] sm:$0xff]
    %v43 = vld [vmem:[%s0 + $0x70] sm:$0xff]
    %v44 = vld [vmem:[%s0 + $0x78] sm:$0xff]
    %v45 = vld [vmem:[%s0 + $0x80] sm:$0xff]
    %v46 = vld [vmem:[%s0 + $0x88] sm:$0xff]
    %v47 = vld [vmem:[%s0 + $0x90] sm:$0xff]
    %v48 = vld [vmem:[%s0 + $0x98] sm:$0xff]
    %v49 = vld [vmem:[%s0 + $0xa0] sm:$0xff]
    %v50 = vld [vmem:[%s0 + $0xa8] sm:$0xff]
    %v51 = vld [vmem:[%s0 + $0xb0] sm:$0xff]
    %v52 = vld [vmem:[%s0 + $0xb8] sm:$0xff]
    %v53 = vld [vmem:[%s0 + $0xc0] sm:$0xff]
    %v54 = vld [vmem:[%s0 + $0xc8] sm:$0xff]
    %v55 = vld [vmem:[%s0 + $0xd0] sm:$0xff]
    %v56 = vld [vmem:[%s0 + $0xd8] sm:$0xff]
    %v57 = vld [vmem:[%s0 + $0xe0] sm:$0xff]
    %v58 = vld [vmem:[%s0 + $0xe8] sm:$0xff]
    %v59 = vld [vmem:[%s0 + $0xf0] sm:$0xff]
    %v60 = vld [vmem:[%s0 + $0xf8] sm:$0xff]
    %v61 = vld [vmem:[%s0 + $0x100] sm:$0xff]
    %v62 = vld [vmem:[%s0 + $0x108] sm:$0xff]
    %v63 = vld [vmem:[%s0 + $0x110] sm:$0xff]
    %v64 = vld [vmem:[%s0 + $0x118] sm:$0xff]
    %v65 = vld [vmem:[%s0 + $0x120] sm:$0xff]
    %v66 = vld [vmem:[%s0 + $0x128] sm:$0xff]
    %v67 = vld [vmem:[%s0 + $0x130] sm:$0xff]
    %v68 = vld [vmem:[%s0 + $0x138] sm:$0xff]
    %v69 = vld [vmem:[%s0 + $0x140] sm:$0xff]
    %v70 = vld [vmem:[%s0 + $0x148] sm:$0xff]
    %v71 = vld [vmem:[%s0 + $0x150] sm:$0xff]
    %v72 = vld [vmem:[%s0 + $0x158] sm:$0xff]
    %v73 = vld [vmem:[%s0 + $0x160] sm:$0xff]
    %v74 = vld [vmem:[%s0 + $0x168] sm:$0xff]
    %v75 = vld [vmem:[%s0 + $0x170] sm:$0xff]
    %v76 = vld [vmem:[%s0 + $0x178] sm:$0xff]
    %v77 = vld [vmem:[%s1] sm:$0xff]
    %v78 = vld [vmem:[%s1 + $0x8] sm:$0xff]
    %v79 = vld [vmem:[%s1 + $0x10] sm:$0xff]
    %v80 = vld [vmem:[%s1 + $0x18] sm:$0x3f]
    %v81 = vld [vmem:[%s2] sm:$0x1]
    %v83 = vlaneseq
    %v84 = vshrl.u32 %v83, 7
    %v85 = vsub.s32 0, %v84
    %v86 = vrot.slane %v81, %v85
    %vm88 = vcmask 244736
    %v90 = vsel %vm88, %v29, 0
    %v93 = vsel %vm88, %v30, 0
    %v96 = vsel %vm88, %v31, 0
    %v99 = vsel %vm88, %v32, 0
    %v102 = vsel %vm88, %v33, 0
    %v105 = vsel %vm88, %v34, 0
    %v108 = vsel %vm88, %v35, 0
    %v111 = vsel %vm88, %v36, 0
    %v114 = vsel %vm88, %v37, 0
    %v117 = vsel %vm88, %v38, 0
    %v120 = vsel %vm88, %v39, 0
    %v123 = vsel %vm88, %v40, 0
    %v126 = vsel %vm88, %v41, 0
    %v129 = vsel %vm88, %v42, 0
    %v132 = vsel %vm88, %v43, 0
    %v135 = vsel %vm88, %v44, 0
    %v138 = vsel %vm88, %v45, 0
    %v141 = vsel %vm88, %v46, 0
    %v144 = vsel %vm88, %v47, 0
    %v147 = vsel %vm88, %v48, 0
    %v150 = vsel %vm88, %v49, 0
    %v153 = vsel %vm88, %v50, 0
    %v156 = vsel %vm88, %v51, 0
    %v159 = vsel %vm88, %v52, 0
    %v162 = vsel %vm88, %v53, 0
    %v165 = vsel %vm88, %v54, 0
    %v168 = vsel %vm88, %v55, 0
    %v171 = vsel %vm88, %v56, 0
    %v174 = vsel %vm88, %v57, 0
    %v177 = vsel %vm88, %v58, 0
    %v180 = vsel %vm88, %v59, 0
    %v183 = vsel %vm88, %v60, 0
    %v186 = vsel %vm88, %v61, 0
    %v189 = vsel %vm88, %v62, 0
    %v192 = vsel %vm88, %v63, 0
    %v195 = vsel %vm88, %v64, 0
    %v198 = vsel %vm88, %v65, 0
    %v201 = vsel %vm88, %v66, 0
    %v204 = vsel %vm88, %v67, 0
    %v207 = vsel %vm88, %v68, 0
    %v210 = vsel %vm88, %v69, 0
    %v213 = vsel %vm88, %v70, 0
    %v216 = vsel %vm88, %v71, 0
    %v219 = vsel %vm88, %v72, 0
    %v222 = vsel %vm88, %v73, 0
    %v225 = vsel %vm88, %v74, 0
    %v228 = vsel %vm88, %v75, 0
    %v231 = vsel %vm88, %v76, 0
    %vm233 = vcmask 1045504
    %v235 = vsel %vm233, %v80, 0
    %237 = vmatprep.subr.mxu0 0.0
    %238 = vmatpush1.msra.mxu0 0.0
    %239 = vmatprep.subr.mxu0 0.0
    %240 = vmatpush1.msra.mxu0 0.0
    %241 = vmatprep.subr.mxu0 0.0
    %242 = vmatpush1.msra.mxu0 0.0
    %243 = vmatprep.subr.mxu0 0.0
    %244 = vmatpush1.msra.mxu0 0.0
    %245 = vmatprep.subr.mxu0 0.0
    %246 = vmatpush1.msra.mxu0 0.0
    %247 = vmatprep.subr.mxu0 0.0
    %248 = vmatpush1.msra.mxu0 0.0
    %249 = vmatprep.subr.mxu0 0.0
    %250 = vmatpush1.msra.mxu0 0.0
    %251 = vmatprep.subr.mxu0 0.0
    %252 = vmatpush1.msra.mxu0 0.0
    %253 = vmatprep.subr.mxu0 0.0
    %254 = vmatpush1.msra.mxu0 0.0
    %255 = vmatprep.subr.mxu0 0.0
    %256 = vmatpush1.msra.mxu0 0.0
    %257 = vmatprep.subr.mxu0 0.0
    %258 = vmatpush1.msra.mxu0 0.0
    %259 = vmatprep.subr.mxu0 0.0
    %260 = vmatpush1.msra.mxu0 0.0
    %261 = vmatprep.subr.mxu0 0.0
    %262 = vmatpush1.msra.mxu0 %v235
    %263 = vmatprep.subr.mxu0 0.0
    %264 = vmatpush1.msra.mxu0 %v79
    %265 = vmatprep.subr.mxu0 0.0
    %266 = vmatpush1.msra.mxu0 %v78
    %267 = vmatprep.subr.mxu0 0.0
    %268 = vmatpush1.msra.mxu0 %v77
    %269 = vmatprep.subr.mxu0 0.0
    %270 = vmatpush2.msra.mxu0 0.0
    %271 = vmatprep.subr.mxu0 0.0
    %272 = vmatpush2.msra.mxu0 0.0
    %273 = vmatprep.subr.mxu0 0.0
    %274 = vmatpush2.msra.mxu0 0.0
    %275 = vmatprep.subr.mxu0 0.0
    %276 = vmatpush2.msra.mxu0 0.0
    %277 = vmatprep.subr.mxu0 0.0
    %278 = vmatpush2.msra.mxu0 0.0
    %279 = vmatprep.subr.mxu0 0.0
    %280 = vmatpush2.msra.mxu0 0.0
    %281 = vmatprep.subr.mxu0 0.0
    %282 = vmatpush2.msra.mxu0 0.0
    %283 = vmatprep.subr.mxu0 0.0
    %284 = vmatpush2.msra.mxu0 0.0
    %285 = vmatprep.subr.mxu0 0.0
    %286 = vmatpush2.msra.mxu0 0.0
    %287 = vmatprep.subr.mxu0 0.0
    %288 = vmatpush2.msra.mxu0 0.0
    %289 = vmatprep.subr.mxu0 0.0
    %290 = vmatpush2.msra.mxu0 0.0
    %291 = vmatprep.subr.mxu0 0.0
    %292 = vmatpush2.msra.mxu0 0.0
    %293 = vmatprep.subr.mxu0 0.0
    %294 = vmatpush2.msra.mxu0 0.0
    %295 = vmatprep.subr.mxu0 0.0
    %296 = vmatpush2.msra.mxu0 0.0
    %297 = vmatprep.subr.mxu0 0.0
    %298 = vmatpush2.msra.mxu0 0.0
    %299 = vmatprep.subr.mxu0 0.0
    %300 = vmatpush2.msra.mxu0 0.0
    %301 = vmatprep.mubr.f32.mxu0 0.0
    %302 = vmatmul.mubr.f32.gmra.mxu0 %v90
    %v303 = vpop.f32.mrf.mxu0
    %v304 = vadd.f32 %v86, %v303
    %v305 = vpop.f32.mrf.mxu0
    %306 = vmatprep.mubr.f32.mxu0 0.0
    %307 = vmatmul.mubr.f32.gmra.mxu0 %v93
    %v308 = vpop.f32.mrf.mxu0
    %v309 = vadd.f32 %v86, %v308
    %v310 = vpop.f32.mrf.mxu0
    %311 = vmatprep.mubr.f32.mxu0 0.0
    %312 = vmatmul.mubr.f32.gmra.mxu0 %v96
    %v313 = vpop.f32.mrf.mxu0
    %v314 = vadd.f32 %v86, %v313
    %v315 = vpop.f32.mrf.mxu0
    %316 = vmatprep.mubr.f32.mxu0 0.0
    %317 = vmatmul.mubr.f32.gmra.mxu0 %v99
    %v318 = vpop.f32.mrf.mxu0
    %v319 = vadd.f32 %v86, %v318
    %v320 = vpop.f32.mrf.mxu0
    %321 = vmatprep.mubr.f32.mxu0 0.0
    %322 = vmatmul.mubr.f32.gmra.mxu0 %v102
    %v323 = vpop.f32.mrf.mxu0
    %v324 = vadd.f32 %v86, %v323
    %v325 = vpop.f32.mrf.mxu0
    %326 = vmatprep.mubr.f32.mxu0 0.0
    %327 = vmatmul.mubr.f32.gmra.mxu0 %v105
    %v328 = vpop.f32.mrf.mxu0
    %v329 = vadd.f32 %v86, %v328
    %v330 = vpop.f32.mrf.mxu0
    %331 = vmatprep.mubr.f32.mxu0 0.0
    %332 = vmatmul.mubr.f32.gmra.mxu0 %v108
    %v333 = vpop.f32.mrf.mxu0
    %v334 = vadd.f32 %v86, %v333
    %v335 = vpop.f32.mrf.mxu0
    %336 = vmatprep.mubr.f32.mxu0 0.0
    %337 = vmatmul.mubr.f32.gmra.mxu0 %v111
    %v338 = vpop.f32.mrf.mxu0
    %v339 = vadd.f32 %v86, %v338
    %v340 = vpop.f32.mrf.mxu0
    %341 = vmatprep.mubr.f32.mxu0 0.0
    %342 = vmatmul.mubr.f32.gmra.mxu0 %v114
    %v343 = vpop.f32.mrf.mxu0
    %v344 = vadd.f32 %v86, %v343
    %v345 = vpop.f32.mrf.mxu0
    %346 = vmatprep.mubr.f32.mxu0 0.0
    %347 = vmatmul.mubr.f32.gmra.mxu0 %v117
    %v348 = vpop.f32.mrf.mxu0
    %v349 = vadd.f32 %v86, %v348
    %v350 = vpop.f32.mrf.mxu0
    %351 = vmatprep.mubr.f32.mxu0 0.0
    %352 = vmatmul.mubr.f32.gmra.mxu0 %v120
    %v353 = vpop.f32.mrf.mxu0
    %v354 = vadd.f32 %v86, %v353
    %v355 = vpop.f32.mrf.mxu0
    %356 = vmatprep.mubr.f32.mxu0 0.0
    %357 = vmatmul.mubr.f32.gmra.mxu0 %v123
    %v358 = vpop.f32.mrf.mxu0
    %v359 = vadd.f32 %v86, %v358
    %v360 = vpop.f32.mrf.mxu0
    %361 = vmatprep.mubr.f32.mxu0 0.0
    %362 = vmatmul.mubr.f32.gmra.mxu0 %v126
    %v363 = vpop.f32.mrf.mxu0
    %v364 = vadd.f32 %v86, %v363
    %v365 = vpop.f32.mrf.mxu0
    %366 = vmatprep.mubr.f32.mxu0 0.0
    %367 = vmatmul.mubr.f32.gmra.mxu0 %v129
    %v368 = vpop.f32.mrf.mxu0
    %v369 = vadd.f32 %v86, %v368
    %v370 = vpop.f32.mrf.mxu0
    %371 = vmatprep.mubr.f32.mxu0 0.0
    %372 = vmatmul.mubr.f32.gmra.mxu0 %v132
    %v373 = vpop.f32.mrf.mxu0
    %v374 = vadd.f32 %v86, %v373
    %v375 = vpop.f32.mrf.mxu0
    %376 = vmatprep.mubr.f32.mxu0 0.0
    %377 = vmatmul.mubr.f32.gmra.mxu0 %v135
    %v378 = vpop.f32.mrf.mxu0
    %v379 = vadd.f32 %v86, %v378
    %v380 = vpop.f32.mrf.mxu0
    %381 = vmatprep.mubr.f32.mxu0 0.0
    %382 = vmatmul.mubr.f32.gmra.mxu0 %v138
    %v383 = vpop.f32.mrf.mxu0
    %v384 = vadd.f32 %v86, %v383
    %v385 = vpop.f32.mrf.mxu0
    %386 = vmatprep.mubr.f32.mxu0 0.0
    %387 = vmatmul.mubr.f32.gmra.mxu0 %v141
    %v388 = vpop.f32.mrf.mxu0
    %v389 = vadd.f32 %v86, %v388
    %v390 = vpop.f32.mrf.mxu0
    %391 = vmatprep.mubr.f32.mxu0 0.0
    %392 = vmatmul.mubr.f32.gmra.mxu0 %v144
    %v393 = vpop.f32.mrf.mxu0
    %v394 = vadd.f32 %v86, %v393
    %v395 = vpop.f32.mrf.mxu0
    %396 = vmatprep.mubr.f32.mxu0 0.0
    %397 = vmatmul.mubr.f32.gmra.mxu0 %v147
    %v398 = vpop.f32.mrf.mxu0
    %v399 = vadd.f32 %v86, %v398
    %v400 = vpop.f32.mrf.mxu0
    %401 = vmatprep.mubr.f32.mxu0 0.0
    %402 = vmatmul.mubr.f32.gmra.mxu0 %v150
    %v403 = vpop.f32.mrf.mxu0
    %v404 = vadd.f32 %v86, %v403
    %v405 = vpop.f32.mrf.mxu0
    %406 = vmatprep.mubr.f32.mxu0 0.0
    %407 = vmatmul.mubr.f32.gmra.mxu0 %v153
    %v408 = vpop.f32.mrf.mxu0
    %v409 = vadd.f32 %v86, %v408
    %v410 = vpop.f32.mrf.mxu0
    %411 = vmatprep.mubr.f32.mxu0 0.0
    %412 = vmatmul.mubr.f32.gmra.mxu0 %v156
    %v413 = vpop.f32.mrf.mxu0
    %v414 = vadd.f32 %v86, %v413
    %v415 = vpop.f32.mrf.mxu0
    %416 = vmatprep.mubr.f32.mxu0 0.0
    %417 = vmatmul.mubr.f32.gmra.mxu0 %v159
    %v418 = vpop.f32.mrf.mxu0
    %v419 = vadd.f32 %v86, %v418
    %v420 = vpop.f32.mrf.mxu0
    %421 = vmatprep.mubr.f32.mxu0 0.0
    %422 = vmatmul.mubr.f32.gmra.mxu0 %v162
    %v423 = vpop.f32.mrf.mxu0
    %v424 = vadd.f32 %v86, %v423
    %v425 = vpop.f32.mrf.mxu0
    %426 = vmatprep.mubr.f32.mxu0 0.0
    %427 = vmatmul.mubr.f32.gmra.mxu0 %v165
    %v428 = vpop.f32.mrf.mxu0
    %v429 = vadd.f32 %v86, %v428
    %v430 = vpop.f32.mrf.mxu0
    %431 = vmatprep.mubr.f32.mxu0 0.0
    %432 = vmatmul.mubr.f32.gmra.mxu0 %v168
    %v433 = vpop.f32.mrf.mxu0
    %v434 = vadd.f32 %v86, %v433
    %v435 = vpop.f32.mrf.mxu0
    %436 = vmatprep.mubr.f32.mxu0 0.0
    %437 = vmatmul.mubr.f32.gmra.mxu0 %v171
    %v438 = vpop.f32.mrf.mxu0
    %v439 = vadd.f32 %v86, %v438
    %v440 = vpop.f32.mrf.mxu0
    %441 = vmatprep.mubr.f32.mxu0 0.0
    %442 = vmatmul.mubr.f32.gmra.mxu0 %v174
    %v443 = vpop.f32.mrf.mxu0
    %v444 = vadd.f32 %v86, %v443
    %v445 = vpop.f32.mrf.mxu0
    %446 = vmatprep.mubr.f32.mxu0 0.0
    %447 = vmatmul.mubr.f32.gmra.mxu0 %v177
    %v448 = vpop.f32.mrf.mxu0
    %v449 = vadd.f32 %v86, %v448
    %v450 = vpop.f32.mrf.mxu0
    %451 = vmatprep.mubr.f32.mxu0 0.0
    %452 = vmatmul.mubr.f32.gmra.mxu0 %v180
    %v453 = vpop.f32.mrf.mxu0
    %v454 = vadd.f32 %v86, %v453
    %v455 = vpop.f32.mrf.mxu0
    %456 = vmatprep.mubr.f32.mxu0 0.0
    %457 = vmatmul.mubr.f32.gmra.mxu0 %v183
    %v458 = vpop.f32.mrf.mxu0
    %v459 = vadd.f32 %v86, %v458
    %v460 = vpop.f32.mrf.mxu0
    %461 = vmatprep.mubr.f32.mxu0 0.0
    %462 = vmatmul.mubr.f32.gmra.mxu0 %v186
    %v463 = vpop.f32.mrf.mxu0
    %v464 = vadd.f32 %v86, %v463
    %v465 = vpop.f32.mrf.mxu0
    %466 = vmatprep.mubr.f32.mxu0 0.0
    %467 = vmatmul.mubr.f32.gmra.mxu0 %v189
    %v468 = vpop.f32.mrf.mxu0
    %v469 = vadd.f32 %v86, %v468
    %v470 = vpop.f32.mrf.mxu0
    %471 = vmatprep.mubr.f32.mxu0 0.0
    %472 = vmatmul.mubr.f32.gmra.mxu0 %v192
    %v473 = vpop.f32.mrf.mxu0
    %v474 = vadd.f32 %v86, %v473
    %v475 = vpop.f32.mrf.mxu0
    %476 = vmatprep.mubr.f32.mxu0 0.0
    %477 = vmatmul.mubr.f32.gmra.mxu0 %v195
    %v478 = vpop.f32.mrf.mxu0
    %v479 = vadd.f32 %v86, %v478
    %v480 = vpop.f32.mrf.mxu0
    %481 = vmatprep.mubr.f32.mxu0 0.0
    %482 = vmatmul.mubr.f32.gmra.mxu0 %v198
    %v483 = vpop.f32.mrf.mxu0
    %v484 = vadd.f32 %v86, %v483
    %v485 = vpop.f32.mrf.mxu0
    %486 = vmatprep.mubr.f32.mxu0 0.0
    %487 = vmatmul.mubr.f32.gmra.mxu0 %v201
    %v488 = vpop.f32.mrf.mxu0
    %v489 = vadd.f32 %v86, %v488
    %v490 = vpop.f32.mrf.mxu0
    %491 = vmatprep.mubr.f32.mxu0 0.0
    %492 = vmatmul.mubr.f32.gmra.mxu0 %v204
    %v493 = vpop.f32.mrf.mxu0
    %v494 = vadd.f32 %v86, %v493
    %v495 = vpop.f32.mrf.mxu0
    %496 = vmatprep.mubr.f32.mxu0 0.0
    %497 = vmatmul.mubr.f32.gmra.mxu0 %v207
    %v498 = vpop.f32.mrf.mxu0
    %v499 = vadd.f32 %v86, %v498
    %v500 = vpop.f32.mrf.mxu0
    %501 = vmatprep.mubr.f32.mxu0 0.0
    %502 = vmatmul.mubr.f32.gmra.mxu0 %v210
    %v503 = vpop.f32.mrf.mxu0
    %v504 = vadd.f32 %v86, %v503
    %v505 = vpop.f32.mrf.mxu0
    %506 = vmatprep.mubr.f32.mxu0 0.0
    %507 = vmatmul.mubr.f32.gmra.mxu0 %v213
    %v508 = vpop.f32.mrf.mxu0
    %v509 = vadd.f32 %v86, %v508
    %v510 = vpop.f32.mrf.mxu0
    %511 = vmatprep.mubr.f32.mxu0 0.0
    %512 = vmatmul.mubr.f32.gmra.mxu0 %v216
    %v513 = vpop.f32.mrf.mxu0
    %v514 = vadd.f32 %v86, %v513
    %v515 = vpop.f32.mrf.mxu0
    %516 = vmatprep.mubr.f32.mxu0 0.0
    %517 = vmatmul.mubr.f32.gmra.mxu0 %v219
    %v518 = vpop.f32.mrf.mxu0
    %v519 = vadd.f32 %v86, %v518
    %v520 = vpop.f32.mrf.mxu0
    %521 = vmatprep.mubr.f32.mxu0 0.0
    %522 = vmatmul.mubr.f32.gmra.mxu0 %v222
    %v523 = vpop.f32.mrf.mxu0
    %v524 = vadd.f32 %v86, %v523
    %v525 = vpop.f32.mrf.mxu0
    %526 = vmatprep.mubr.f32.mxu0 0.0
    %527 = vmatmul.mubr.f32.gmra.mxu0 %v225
    %v528 = vpop.f32.mrf.mxu0
    %v529 = vadd.f32 %v86, %v528
    %v530 = vpop.f32.mrf.mxu0
    %531 = vmatprep.mubr.f32.mxu0 0.0
    %532 = vmatmul.mubr.f32.gmra.mxu0 %v228
    %v533 = vpop.f32.mrf.mxu0
    %v534 = vadd.f32 %v86, %v533
    %v535 = vpop.f32.mrf.mxu0
    %536 = vmatprep.mubr.f32.mxu0 0.0
    %537 = vmatmul.mubr.f32.gmra.mxu0 %v231
    %v538 = vpop.f32.mrf.mxu0
    %v539 = vadd.f32 %v86, %v538
    %v540 = vpop.f32.mrf.mxu0
    %541 = vdwg.mxu0
    %v542 = vmax.f32 %v304, 0.0
    %v543 = vmax.f32 %v309, 0.0
    %v544 = vmax.f32 %v314, 0.0
    %v545 = vmax.f32 %v319, 0.0
    %v546 = vmax.f32 %v324, 0.0
    %v547 = vmax.f32 %v329, 0.0
    %v548 = vmax.f32 %v334, 0.0
    %v549 = vmax.f32 %v339, 0.0
    %v550 = vmax.f32 %v344, 0.0
    %v551 = vmax.f32 %v349, 0.0
    %v552 = vmax.f32 %v354, 0.0
    %v553 = vmax.f32 %v359, 0.0
    %v554 = vmax.f32 %v364, 0.0
    %v555 = vmax.f32 %v369, 0.0
    %v556 = vmax.f32 %v374, 0.0
    %v557 = vmax.f32 %v379, 0.0
    %v558 = vmax.f32 %v384, 0.0
    %v559 = vmax.f32 %v389, 0.0
    %v560 = vmax.f32 %v394, 0.0
    %v561 = vmax.f32 %v399, 0.0
    %v562 = vmax.f32 %v404, 0.0
    %v563 = vmax.f32 %v409, 0.0
    %v564 = vmax.f32 %v414, 0.0
    %v565 = vmax.f32 %v419, 0.0
    %v566 = vmax.f32 %v424, 0.0
    %v567 = vmax.f32 %v429, 0.0
    %v568 = vmax.f32 %v434, 0.0
    %v569 = vmax.f32 %v439, 0.0
    %v570 = vmax.f32 %v444, 0.0
    %v571 = vmax.f32 %v449, 0.0
    %v572 = vmax.f32 %v454, 0.0
    %v573 = vmax.f32 %v459, 0.0
    %v574 = vmax.f32 %v464, 0.0
    %v575 = vmax.f32 %v469, 0.0
    %v576 = vmax.f32 %v474, 0.0
    %v577 = vmax.f32 %v479, 0.0
    %v578 = vmax.f32 %v484, 0.0
    %v579 = vmax.f32 %v489, 0.0
    %v580 = vmax.f32 %v494, 0.0
    %v581 = vmax.f32 %v499, 0.0
    %v582 = vmax.f32 %v504, 0.0
    %v583 = vmax.f32 %v509, 0.0
    %v584 = vmax.f32 %v514, 0.0
    %v585 = vmax.f32 %v519, 0.0
    %v586 = vmax.f32 %v524, 0.0
    %v587 = vmax.f32 %v529, 0.0
    %v588 = vmax.f32 %v534, 0.0
    %v589 = vmax.f32 %v539, 0.0
    %v590 = vld [vmem:[%s3] sm:$0xff]
    %v591 = vld [vmem:[%s3 + $0x8] sm:$0xff]
    %v592 = vld [vmem:[%s3 + $0x10] sm:$0xff]
    %v593 = vld [vmem:[%s3 + $0x18] sm:$0x3f]
    %v594 = vld [vmem:[%s4] sm:$0x1]
    %v596 = vlaneseq
    %v597 = vshrl.u32 %v596, 7
    %v598 = vsub.s32 0, %v597
    %v599 = vrot.slane %v594, %v598
    %v602 = vsel %vm88, %v542, 0
    %v605 = vsel %vm88, %v543, 0
    %v608 = vsel %vm88, %v544, 0
    %v611 = vsel %vm88, %v545, 0
    %v614 = vsel %vm88, %v546, 0
    %v617 = vsel %vm88, %v547, 0
    %v620 = vsel %vm88, %v548, 0
    %v623 = vsel %vm88, %v549, 0
    %v626 = vsel %vm88, %v550, 0
    %v629 = vsel %vm88, %v551, 0
    %v632 = vsel %vm88, %v552, 0
    %v635 = vsel %vm88, %v553, 0
    %v638 = vsel %vm88, %v554, 0
    %v641 = vsel %vm88, %v555, 0
    %v644 = vsel %vm88, %v556, 0
    %v647 = vsel %vm88, %v557, 0
    %v650 = vsel %vm88, %v558, 0
    %v653 = vsel %vm88, %v559, 0
    %v656 = vsel %vm88, %v560, 0
    %v659 = vsel %vm88, %v561, 0
    %v662 = vsel %vm88, %v562, 0
    %v665 = vsel %vm88, %v563, 0
    %v668 = vsel %vm88, %v564, 0
    %v671 = vsel %vm88, %v565, 0
    %v674 = vsel %vm88, %v566, 0
    %v677 = vsel %vm88, %v567, 0
    %v680 = vsel %vm88, %v568, 0
    %v683 = vsel %vm88, %v569, 0
    %v686 = vsel %vm88, %v570, 0
    %v689 = vsel %vm88, %v571, 0
    %v692 = vsel %vm88, %v572, 0
    %v695 = vsel %vm88, %v573, 0
    %v698 = vsel %vm88, %v574, 0
    %v701 = vsel %vm88, %v575, 0
    %v704 = vsel %vm88, %v576, 0
    %v707 = vsel %vm88, %v577, 0
    %v710 = vsel %vm88, %v578, 0
    %v713 = vsel %vm88, %v579, 0
    %v716 = vsel %vm88, %v580, 0
    %v719 = vsel %vm88, %v581, 0
    %v722 = vsel %vm88, %v582, 0
    %v725 = vsel %vm88, %v583, 0
    %v728 = vsel %vm88, %v584, 0
    %v731 = vsel %vm88, %v585, 0
    %v734 = vsel %vm88, %v586, 0
    %v737 = vsel %vm88, %v587, 0
    %v740 = vsel %vm88, %v588, 0
    %v743 = vsel %vm88, %v589, 0
    %v746 = vsel %vm233, %v593, 0
    %748 = vmatprep.subr.mxu0 0.0
    %749 = vmatpush1.msra.mxu0 0.0
    %750 = vmatprep.subr.mxu0 0.0
    %751 = vmatpush1.msra.mxu0 0.0
    %752 = vmatprep.subr.mxu0 0.0
    %753 = vmatpush1.msra.mxu0 0.0
    %754 = vmatprep.subr.mxu0 0.0
    %755 = vmatpush1.msra.mxu0 0.0
    %756 = vmatprep.subr.mxu0 0.0
    %757 = vmatpush1.msra.mxu0 0.0
    %758 = vmatprep.subr.mxu0 0.0
    %759 = vmatpush1.msra.mxu0 0.0
    %760 = vmatprep.subr.mxu0 0.0
    %761 = vmatpush1.msra.mxu0 0.0
    %762 = vmatprep.subr.mxu0 0.0
    %763 = vmatpush1.msra.mxu0 0.0
    %764 = vmatprep.subr.mxu0 0.0
    %765 = vmatpush1.msra.mxu0 0.0
    %766 = vmatprep.subr.mxu0 0.0
    %767 = vmatpush1.msra.mxu0 0.0
    %768 = vmatprep.subr.mxu0 0.0
    %769 = vmatpush1.msra.mxu0 0.0
    %770 = vmatprep.subr.mxu0 0.0
    %771 = vmatpush1.msra.mxu0 0.0
    %772 = vmatprep.subr.mxu0 0.0
    %773 = vmatpush1.msra.mxu0 %v746
    %774 = vmatprep.subr.mxu0 0.0
    %775 = vmatpush1.msra.mxu0 %v592
    %776 = vmatprep.subr.mxu0 0.0
    %777 = vmatpush1.msra.mxu0 %v591
    %778 = vmatprep.subr.mxu0 0.0
    %779 = vmatpush1.msra.mxu0 %v590
    %780 = vmatprep.subr.mxu0 0.0
    %781 = vmatpush2.msra.mxu0 0.0
    %782 = vmatprep.subr.mxu0 0.0
    %783 = vmatpush2.msra.mxu0 0.0
    %784 = vmatprep.subr.mxu0 0.0
    %785 = vmatpush2.msra.mxu0 0.0
    %786 = vmatprep.subr.mxu0 0.0
    %787 = vmatpush2.msra.mxu0 0.0
    %788 = vmatprep.subr.mxu0 0.0
    %789 = vmatpush2.msra.mxu0 0.0
    %790 = vmatprep.subr.mxu0 0.0
    %791 = vmatpush2.msra.mxu0 0.0
    %792 = vmatprep.subr.mxu0 0.0
    %793 = vmatpush2.msra.mxu0 0.0
    %794 = vmatprep.subr.mxu0 0.0
    %795 = vmatpush2.msra.mxu0 0.0
    %796 = vmatprep.subr.mxu0 0.0
    %797 = vmatpush2.msra.mxu0 0.0
    %798 = vmatprep.subr.mxu0 0.0
    %799 = vmatpush2.msra.mxu0 0.0
    %800 = vmatprep.subr.mxu0 0.0
    %801 = vmatpush2.msra.mxu0 0.0
    %802 = vmatprep.subr.mxu0 0.0
    %803 = vmatpush2.msra.mxu0 0.0
    %804 = vmatprep.subr.mxu0 0.0
    %805 = vmatpush2.msra.mxu0 0.0
    %806 = vmatprep.subr.mxu0 0.0
    %807 = vmatpush2.msra.mxu0 0.0
    %808 = vmatprep.subr.mxu0 0.0
    %809 = vmatpush2.msra.mxu0 0.0
    %810 = vmatprep.subr.mxu0 0.0
    %811 = vmatpush2.msra.mxu0 0.0
    %812 = vmatprep.mubr.f32.mxu0 0.0
    %813 = vmatmul.mubr.f32.gmra.mxu0 %v602
    %v814 = vpop.f32.mrf.mxu0
    %v815 = vadd.f32 %v599, %v814
    %v816 = vpop.f32.mrf.mxu0
    %817 = vmatprep.mubr.f32.mxu0 0.0
    %818 = vmatmul.mubr.f32.gmra.mxu0 %v605
    %v819 = vpop.f32.mrf.mxu0
    %v820 = vadd.f32 %v599, %v819
    %v821 = vpop.f32.mrf.mxu0
    %822 = vmatprep.mubr.f32.mxu0 0.0
    %823 = vmatmul.mubr.f32.gmra.mxu0 %v608
    %v824 = vpop.f32.mrf.mxu0
    %v825 = vadd.f32 %v599, %v824
    %v826 = vpop.f32.mrf.mxu0
    %827 = vmatprep.mubr.f32.mxu0 0.0
    %828 = vmatmul.mubr.f32.gmra.mxu0 %v611
    %v829 = vpop.f32.mrf.mxu0
    %v830 = vadd.f32 %v599, %v829
    %v831 = vpop.f32.mrf.mxu0
    %832 = vmatprep.mubr.f32.mxu0 0.0
    %833 = vmatmul.mubr.f32.gmra.mxu0 %v614
    %v834 = vpop.f32.mrf.mxu0
    %v835 = vadd.f32 %v599, %v834
    %v836 = vpop.f32.mrf.mxu0
    %837 = vmatprep.mubr.f32.mxu0 0.0
    %838 = vmatmul.mubr.f32.gmra.mxu0 %v617
    %v839 = vpop.f32.mrf.mxu0
    %v840 = vadd.f32 %v599, %v839
    %v841 = vpop.f32.mrf.mxu0
    %842 = vmatprep.mubr.f32.mxu0 0.0
    %843 = vmatmul.mubr.f32.gmra.mxu0 %v620
    %v844 = vpop.f32.mrf.mxu0
    %v845 = vadd.f32 %v599, %v844
    %v846 = vpop.f32.mrf.mxu0
    %847 = vmatprep.mubr.f32.mxu0 0.0
    %848 = vmatmul.mubr.f32.gmra.mxu0 %v623
    %v849 = vpop.f32.mrf.mxu0
    %v850 = vadd.f32 %v599, %v849
    %v851 = vpop.f32.mrf.mxu0
    %852 = vmatprep.mubr.f32.mxu0 0.0
    %853 = vmatmul.mubr.f32.gmra.mxu0 %v626
    %v854 = vpop.f32.mrf.mxu0
    %v855 = vadd.f32 %v599, %v854
    %v856 = vpop.f32.mrf.mxu0
    %857 = vmatprep.mubr.f32.mxu0 0.0
    %858 = vmatmul.mubr.f32.gmra.mxu0 %v629
    %v859 = vpop.f32.mrf.mxu0
    %v860 = vadd.f32 %v599, %v859
    %v861 = vpop.f32.mrf.mxu0
    %862 = vmatprep.mubr.f32.mxu0 0.0
    %863 = vmatmul.mubr.f32.gmra.mxu0 %v632
    %v864 = vpop.f32.mrf.mxu0
    %v865 = vadd.f32 %v599, %v864
    %v866 = vpop.f32.mrf.mxu0
    %867 = vmatprep.mubr.f32.mxu0 0.0
    %868 = vmatmul.mubr.f32.gmra.mxu0 %v635
    %v869 = vpop.f32.mrf.mxu0
    %v870 = vadd.f32 %v599, %v869
    %v871 = vpop.f32.mrf.mxu0
    %872 = vmatprep.mubr.f32.mxu0 0.0
    %873 = vmatmul.mubr.f32.gmra.mxu0 %v638
    %v874 = vpop.f32.mrf.mxu0
    %v875 = vadd.f32 %v599, %v874
    %v876 = vpop.f32.mrf.mxu0
    %877 = vmatprep.mubr.f32.mxu0 0.0
    %878 = vmatmul.mubr.f32.gmra.mxu0 %v641
    %v879 = vpop.f32.mrf.mxu0
    %v880 = vadd.f32 %v599, %v879
    %v881 = vpop.f32.mrf.mxu0
    %882 = vmatprep.mubr.f32.mxu0 0.0
    %883 = vmatmul.mubr.f32.gmra.mxu0 %v644
    %v884 = vpop.f32.mrf.mxu0
    %v885 = vadd.f32 %v599, %v884
    %v886 = vpop.f32.mrf.mxu0
    %887 = vmatprep.mubr.f32.mxu0 0.0
    %888 = vmatmul.mubr.f32.gmra.mxu0 %v647
    %v889 = vpop.f32.mrf.mxu0
    %v890 = vadd.f32 %v599, %v889
    %v891 = vpop.f32.mrf.mxu0
    %892 = vmatprep.mubr.f32.mxu0 0.0
    %893 = vmatmul.mubr.f32.gmra.mxu0 %v650
    %v894 = vpop.f32.mrf.mxu0
    %v895 = vadd.f32 %v599, %v894
    %v896 = vpop.f32.mrf.mxu0
    %897 = vmatprep.mubr.f32.mxu0 0.0
    %898 = vmatmul.mubr.f32.gmra.mxu0 %v653
    %v899 = vpop.f32.mrf.mxu0
    %v900 = vadd.f32 %v599, %v899
    %v901 = vpop.f32.mrf.mxu0
    %902 = vmatprep.mubr.f32.mxu0 0.0
    %903 = vmatmul.mubr.f32.gmra.mxu0 %v656
    %v904 = vpop.f32.mrf.mxu0
    %v905 = vadd.f32 %v599, %v904
    %v906 = vpop.f32.mrf.mxu0
    %907 = vmatprep.mubr.f32.mxu0 0.0
    %908 = vmatmul.mubr.f32.gmra.mxu0 %v659
    %v909 = vpop.f32.mrf.mxu0
    %v910 = vadd.f32 %v599, %v909
    %v911 = vpop.f32.mrf.mxu0
    %912 = vmatprep.mubr.f32.mxu0 0.0
    %913 = vmatmul.mubr.f32.gmra.mxu0 %v662
    %v914 = vpop.f32.mrf.mxu0
    %v915 = vadd.f32 %v599, %v914
    %v916 = vpop.f32.mrf.mxu0
    %917 = vmatprep.mubr.f32.mxu0 0.0
    %918 = vmatmul.mubr.f32.gmra.mxu0 %v665
    %v919 = vpop.f32.mrf.mxu0
    %v920 = vadd.f32 %v599, %v919
    %v921 = vpop.f32.mrf.mxu0
    %922 = vmatprep.mubr.f32.mxu0 0.0
    %923 = vmatmul.mubr.f32.gmra.mxu0 %v668
    %v924 = vpop.f32.mrf.mxu0
    %v925 = vadd.f32 %v599, %v924
    %v926 = vpop.f32.mrf.mxu0
    %927 = vmatprep.mubr.f32.mxu0 0.0
    %928 = vmatmul.mubr.f32.gmra.mxu0 %v671
    %v929 = vpop.f32.mrf.mxu0
    %v930 = vadd.f32 %v599, %v929
    %v931 = vpop.f32.mrf.mxu0
    %932 = vmatprep.mubr.f32.mxu0 0.0
    %933 = vmatmul.mubr.f32.gmra.mxu0 %v674
    %v934 = vpop.f32.mrf.mxu0
    %v935 = vadd.f32 %v599, %v934
    %v936 = vpop.f32.mrf.mxu0
    %937 = vmatprep.mubr.f32.mxu0 0.0
    %938 = vmatmul.mubr.f32.gmra.mxu0 %v677
    %v939 = vpop.f32.mrf.mxu0
    %v940 = vadd.f32 %v599, %v939
    %v941 = vpop.f32.mrf.mxu0
    %942 = vmatprep.mubr.f32.mxu0 0.0
    %943 = vmatmul.mubr.f32.gmra.mxu0 %v680
    %v944 = vpop.f32.mrf.mxu0
    %v945 = vadd.f32 %v599, %v944
    %v946 = vpop.f32.mrf.mxu0
    %947 = vmatprep.mubr.f32.mxu0 0.0
    %948 = vmatmul.mubr.f32.gmra.mxu0 %v683
    %v949 = vpop.f32.mrf.mxu0
    %v950 = vadd.f32 %v599, %v949
    %v951 = vpop.f32.mrf.mxu0
    %952 = vmatprep.mubr.f32.mxu0 0.0
    %953 = vmatmul.mubr.f32.gmra.mxu0 %v686
    %v954 = vpop.f32.mrf.mxu0
    %v955 = vadd.f32 %v599, %v954
    %v956 = vpop.f32.mrf.mxu0
    %957 = vmatprep.mubr.f32.mxu0 0.0
    %958 = vmatmul.mubr.f32.gmra.mxu0 %v689
    %v959 = vpop.f32.mrf.mxu0
    %v960 = vadd.f32 %v599, %v959
    %v961 = vpop.f32.mrf.mxu0
    %962 = vmatprep.mubr.f32.mxu0 0.0
    %963 = vmatmul.mubr.f32.gmra.mxu0 %v692
    %v964 = vpop.f32.mrf.mxu0
    %v965 = vadd.f32 %v599, %v964
    %v966 = vpop.f32.mrf.mxu0
    %967 = vmatprep.mubr.f32.mxu0 0.0
    %968 = vmatmul.mubr.f32.gmra.mxu0 %v695
    %v969 = vpop.f32.mrf.mxu0
    %v970 = vadd.f32 %v599, %v969
    %v971 = vpop.f32.mrf.mxu0
    %972 = vmatprep.mubr.f32.mxu0 0.0
    %973 = vmatmul.mubr.f32.gmra.mxu0 %v698
    %v974 = vpop.f32.mrf.mxu0
    %v975 = vadd.f32 %v599, %v974
    %v976 = vpop.f32.mrf.mxu0
    %977 = vmatprep.mubr.f32.mxu0 0.0
    %978 = vmatmul.mubr.f32.gmra.mxu0 %v701
    %v979 = vpop.f32.mrf.mxu0
    %v980 = vadd.f32 %v599, %v979
    %v981 = vpop.f32.mrf.mxu0
    %982 = vmatprep.mubr.f32.mxu0 0.0
    %983 = vmatmul.mubr.f32.gmra.mxu0 %v704
    %v984 = vpop.f32.mrf.mxu0
    %v985 = vadd.f32 %v599, %v984
    %v986 = vpop.f32.mrf.mxu0
    %987 = vmatprep.mubr.f32.mxu0 0.0
    %988 = vmatmul.mubr.f32.gmra.mxu0 %v707
    %v989 = vpop.f32.mrf.mxu0
    %v990 = vadd.f32 %v599, %v989
    %v991 = vpop.f32.mrf.mxu0
    %992 = vmatprep.mubr.f32.mxu0 0.0
    %993 = vmatmul.mubr.f32.gmra.mxu0 %v710
    %v994 = vpop.f32.mrf.mxu0
    %v995 = vadd.f32 %v599, %v994
    %v996 = vpop.f32.mrf.mxu0
    %997 = vmatprep.mubr.f32.mxu0 0.0
    %998 = vmatmul.mubr.f32.gmra.mxu0 %v713
    %v999 = vpop.f32.mrf.mxu0
    %v1000 = vadd.f32 %v599, %v999
    %v1001 = vpop.f32.mrf.mxu0
    %1002 = vmatprep.mubr.f32.mxu0 0.0
    %1003 = vmatmul.mubr.f32.gmra.mxu0 %v716
    %v1004 = vpop.f32.mrf.mxu0
    %v1005 = vadd.f32 %v599, %v1004
    %v1006 = vpop.f32.mrf.mxu0
    %1007 = vmatprep.mubr.f32.mxu0 0.0
    %1008 = vmatmul.mubr.f32.gmra.mxu0 %v719
    %v1009 = vpop.f32.mrf.mxu0
    %v1010 = vadd.f32 %v599, %v1009
    %v1011 = vpop.f32.mrf.mxu0
    %1012 = vmatprep.mubr.f32.mxu0 0.0
    %1013 = vmatmul.mubr.f32.gmra.mxu0 %v722
    %v1014 = vpop.f32.mrf.mxu0
    %v1015 = vadd.f32 %v599, %v1014
    %v1016 = vpop.f32.mrf.mxu0
    %1017 = vmatprep.mubr.f32.mxu0 0.0
    %1018 = vmatmul.mubr.f32.gmra.mxu0 %v725
    %v1019 = vpop.f32.mrf.mxu0
    %v1020 = vadd.f32 %v599, %v1019
    %v1021 = vpop.f32.mrf.mxu0
    %1022 = vmatprep.mubr.f32.mxu0 0.0
    %1023 = vmatmul.mubr.f32.gmra.mxu0 %v728
    %v1024 = vpop.f32.mrf.mxu0
    %v1025 = vadd.f32 %v599, %v1024
    %v1026 = vpop.f32.mrf.mxu0
    %1027 = vmatprep.mubr.f32.mxu0 0.0
    %1028 = vmatmul.mubr.f32.gmra.mxu0 %v731
    %v1029 = vpop.f32.mrf.mxu0
    %v1030 = vadd.f32 %v599, %v1029
    %v1031 = vpop.f32.mrf.mxu0
    %1032 = vmatprep.mubr.f32.mxu0 0.0
    %1033 = vmatmul.mubr.f32.gmra.mxu0 %v734
    %v1034 = vpop.f32.mrf.mxu0
    %v1035 = vadd.f32 %v599, %v1034
    %v1036 = vpop.f32.mrf.mxu0
    %1037 = vmatprep.mubr.f32.mxu0 0.0
    %1038 = vmatmul.mubr.f32.gmra.mxu0 %v737
    %v1039 = vpop.f32.mrf.mxu0
    %v1040 = vadd.f32 %v599, %v1039
    %v1041 = vpop.f32.mrf.mxu0
    %1042 = vmatprep.mubr.f32.mxu0 0.0
    %1043 = vmatmul.mubr.f32.gmra.mxu0 %v740
    %v1044 = vpop.f32.mrf.mxu0
    %v1045 = vadd.f32 %v599, %v1044
    %v1046 = vpop.f32.mrf.mxu0
    %1047 = vmatprep.mubr.f32.mxu0 0.0
    %1048 = vmatmul.mubr.f32.gmra.mxu0 %v743
    %v1049 = vpop.f32.mrf.mxu0
    %v1050 = vadd.f32 %v599, %v1049
    %v1051 = vpop.f32.mrf.mxu0
    %1052 = vdwg.mxu0
    %v1053 = vmax.f32 %v815, 0.0
    %v1054 = vmax.f32 %v820, 0.0
    %v1055 = vmax.f32 %v825, 0.0
    %v1056 = vmax.f32 %v830, 0.0
    %v1057 = vmax.f32 %v835, 0.0
    %v1058 = vmax.f32 %v840, 0.0
    %v1059 = vmax.f32 %v845, 0.0
    %v1060 = vmax.f32 %v850, 0.0
    %v1061 = vmax.f32 %v855, 0.0
    %v1062 = vmax.f32 %v860, 0.0
    %v1063 = vmax.f32 %v865, 0.0
    %v1064 = vmax.f32 %v870, 0.0
    %v1065 = vmax.f32 %v875, 0.0
    %v1066 = vmax.f32 %v880, 0.0
    %v1067 = vmax.f32 %v885, 0.0
    %v1068 = vmax.f32 %v890, 0.0
    %v1069 = vmax.f32 %v895, 0.0
    %v1070 = vmax.f32 %v900, 0.0
    %v1071 = vmax.f32 %v905, 0.0
    %v1072 = vmax.f32 %v910, 0.0
    %v1073 = vmax.f32 %v915, 0.0
    %v1074 = vmax.f32 %v920, 0.0
    %v1075 = vmax.f32 %v925, 0.0
    %v1076 = vmax.f32 %v930, 0.0
    %v1077 = vmax.f32 %v935, 0.0
    %v1078 = vmax.f32 %v940, 0.0
    %v1079 = vmax.f32 %v945, 0.0
    %v1080 = vmax.f32 %v950, 0.0
    %v1081 = vmax.f32 %v955, 0.0
    %v1082 = vmax.f32 %v960, 0.0
    %v1083 = vmax.f32 %v965, 0.0
    %v1084 = vmax.f32 %v970, 0.0
    %v1085 = vmax.f32 %v975, 0.0
    %v1086 = vmax.f32 %v980, 0.0
    %v1087 = vmax.f32 %v985, 0.0
    %v1088 = vmax.f32 %v990, 0.0
    %v1089 = vmax.f32 %v995, 0.0
    %v1090 = vmax.f32 %v1000, 0.0
    %v1091 = vmax.f32 %v1005, 0.0
    %v1092 = vmax.f32 %v1010, 0.0
    %v1093 = vmax.f32 %v1015, 0.0
    %v1094 = vmax.f32 %v1020, 0.0
    %v1095 = vmax.f32 %v1025, 0.0
    %v1096 = vmax.f32 %v1030, 0.0
    %v1097 = vmax.f32 %v1035, 0.0
    %v1098 = vmax.f32 %v1040, 0.0
    %v1099 = vmax.f32 %v1045, 0.0
    %v1100 = vmax.f32 %v1050, 0.0
    %v1101 = vld [vmem:[%s5] sm:$0x1]
    %v1103 = vlaneseq
    %v1104 = vshrl.u32 %v1103, 7
    %v1105 = vsub.s32 0, %v1104
    %v1106 = vrot.slane %v1101, %v1105
    %v1108 = vmul.f32 %v1053, %v1106
    %v1109 = vmul.f32 %v1054, %v1106
    %v1110 = vmul.f32 %v1055, %v1106
    %v1111 = vmul.f32 %v1056, %v1106
    %v1112 = vmul.f32 %v1057, %v1106
    %v1113 = vmul.f32 %v1058, %v1106
    %v1114 = vmul.f32 %v1059, %v1106
    %v1115 = vmul.f32 %v1060, %v1106
    %v1116 = vmul.f32 %v1061, %v1106
    %v1117 = vmul.f32 %v1062, %v1106
    %v1118 = vmul.f32 %v1063, %v1106
    %v1119 = vmul.f32 %v1064, %v1106
    %v1120 = vmul.f32 %v1065, %v1106
    %v1121 = vmul.f32 %v1066, %v1106
    %v1122 = vmul.f32 %v1067, %v1106
    %v1123 = vmul.f32 %v1068, %v1106
    %v1124 = vmul.f32 %v1069, %v1106
    %v1125 = vmul.f32 %v1070, %v1106
    %v1126 = vmul.f32 %v1071, %v1106
    %v1127 = vmul.f32 %v1072, %v1106
    %v1128 = vmul.f32 %v1073, %v1106
    %v1129 = vmul.f32 %v1074, %v1106
    %v1130 = vmul.f32 %v1075, %v1106
    %v1131 = vmul.f32 %v1076, %v1106
    %v1132 = vmul.f32 %v1077, %v1106
    %v1133 = vmul.f32 %v1078, %v1106
    %v1134 = vmul.f32 %v1079, %v1106
    %v1135 = vmul.f32 %v1080, %v1106
    %v1136 = vmul.f32 %v1081, %v1106
    %v1137 = vmul.f32 %v1082, %v1106
    %v1138 = vmul.f32 %v1083, %v1106
    %v1139 = vmul.f32 %v1084, %v1106
    %v1140 = vmul.f32 %v1085, %v1106
    %v1141 = vmul.f32 %v1086, %v1106
    %v1142 = vmul.f32 %v1087, %v1106
    %v1143 = vmul.f32 %v1088, %v1106
    %v1144 = vmul.f32 %v1089, %v1106
    %v1145 = vmul.f32 %v1090, %v1106
    %v1146 = vmul.f32 %v1091, %v1106
    %v1147 = vmul.f32 %v1092, %v1106
    %v1148 = vmul.f32 %v1093, %v1106
    %v1149 = vmul.f32 %v1094, %v1106
    %v1150 = vmul.f32 %v1095, %v1106
    %v1151 = vmul.f32 %v1096, %v1106
    %v1152 = vmul.f32 %v1097, %v1106
    %v1153 = vmul.f32 %v1098, %v1106
    %v1154 = vmul.f32 %v1099, %v1106
    %v1155 = vmul.f32 %v1100, %v1106
    %vm1156 = vcmask 121856
    %v1157 = vsel %vm1156, %v1108, 0.0
    %1158 = vadd.xlane.f32.xlu0 %v1157
    %v1159 = vpop.xlane.xlu0 %1158
    %v1160 = vsel %vm1156, %v1109, 0.0
    %1161 = vadd.xlane.f32.xlu0 %v1160
    %v1162 = vpop.xlane.xlu0 %1161
    %v1163 = vsel %vm1156, %v1110, 0.0
    %1164 = vadd.xlane.f32.xlu0 %v1163
    %v1165 = vpop.xlane.xlu0 %1164
    %v1166 = vsel %vm1156, %v1111, 0.0
    %1167 = vadd.xlane.f32.xlu0 %v1166
    %v1168 = vpop.xlane.xlu0 %1167
    %v1169 = vsel %vm1156, %v1112, 0.0
    %1170 = vadd.xlane.f32.xlu0 %v1169
    %v1171 = vpop.xlane.xlu0 %1170
    %v1172 = vsel %vm1156, %v1113, 0.0
    %1173 = vadd.xlane.f32.xlu0 %v1172
    %v1174 = vpop.xlane.xlu0 %1173
    %v1175 = vsel %vm1156, %v1114, 0.0
    %1176 = vadd.xlane.f32.xlu0 %v1175
    %v1177 = vpop.xlane.xlu0 %1176
    %v1178 = vsel %vm1156, %v1115, 0.0
    %1179 = vadd.xlane.f32.xlu0 %v1178
    %v1180 = vpop.xlane.xlu0 %1179
    %v1181 = vsel %vm1156, %v1116, 0.0
    %1182 = vadd.xlane.f32.xlu0 %v1181
    %v1183 = vpop.xlane.xlu0 %1182
    %v1184 = vsel %vm1156, %v1117, 0.0
    %1185 = vadd.xlane.f32.xlu0 %v1184
    %v1186 = vpop.xlane.xlu0 %1185
    %v1187 = vsel %vm1156, %v1118, 0.0
    %1188 = vadd.xlane.f32.xlu0 %v1187
    %v1189 = vpop.xlane.xlu0 %1188
    %v1190 = vsel %vm1156, %v1119, 0.0
    %1191 = vadd.xlane.f32.xlu0 %v1190
    %v1192 = vpop.xlane.xlu0 %1191
    %v1193 = vsel %vm1156, %v1120, 0.0
    %1194 = vadd.xlane.f32.xlu0 %v1193
    %v1195 = vpop.xlane.xlu0 %1194
    %v1196 = vsel %vm1156, %v1121, 0.0
    %1197 = vadd.xlane.f32.xlu0 %v1196
    %v1198 = vpop.xlane.xlu0 %1197
    %v1199 = vsel %vm1156, %v1122, 0.0
    %1200 = vadd.xlane.f32.xlu0 %v1199
    %v1201 = vpop.xlane.xlu0 %1200
    %v1202 = vsel %vm1156, %v1123, 0.0
    %1203 = vadd.xlane.f32.xlu0 %v1202
    %v1204 = vpop.xlane.xlu0 %1203
    %v1205 = vsel %vm1156, %v1124, 0.0
    %1206 = vadd.xlane.f32.xlu0 %v1205
    %v1207 = vpop.xlane.xlu0 %1206
    %v1208 = vsel %vm1156, %v1125, 0.0
    %1209 = vadd.xlane.f32.xlu0 %v1208
    %v1210 = vpop.xlane.xlu0 %1209
    %v1211 = vsel %vm1156, %v1126, 0.0
    %1212 = vadd.xlane.f32.xlu0 %v1211
    %v1213 = vpop.xlane.xlu0 %1212
    %v1214 = vsel %vm1156, %v1127, 0.0
    %1215 = vadd.xlane.f32.xlu0 %v1214
    %v1216 = vpop.xlane.xlu0 %1215
    %v1217 = vsel %vm1156, %v1128, 0.0
    %1218 = vadd.xlane.f32.xlu0 %v1217
    %v1219 = vpop.xlane.xlu0 %1218
    %v1220 = vsel %vm1156, %v1129, 0.0
    %1221 = vadd.xlane.f32.xlu0 %v1220
    %v1222 = vpop.xlane.xlu0 %1221
    %v1223 = vsel %vm1156, %v1130, 0.0
    %1224 = vadd.xlane.f32.xlu0 %v1223
    %v1225 = vpop.xlane.xlu0 %1224
    %v1226 = vsel %vm1156, %v1131, 0.0
    %1227 = vadd.xlane.f32.xlu0 %v1226
    %v1228 = vpop.xlane.xlu0 %1227
    %v1229 = vsel %vm1156, %v1132, 0.0
    %1230 = vadd.xlane.f32.xlu0 %v1229
    %v1231 = vpop.xlane.xlu0 %1230
    %v1232 = vsel %vm1156, %v1133, 0.0
    %1233 = vadd.xlane.f32.xlu0 %v1232
    %v1234 = vpop.xlane.xlu0 %1233
    %v1235 = vsel %vm1156, %v1134, 0.0
    %1236 = vadd.xlane.f32.xlu0 %v1235
    %v1237 = vpop.xlane.xlu0 %1236
    %v1238 = vsel %vm1156, %v1135, 0.0
    %1239 = vadd.xlane.f32.xlu0 %v1238
    %v1240 = vpop.xlane.xlu0 %1239
    %v1241 = vsel %vm1156, %v1136, 0.0
    %1242 = vadd.xlane.f32.xlu0 %v1241
    %v1243 = vpop.xlane.xlu0 %1242
    %v1244 = vsel %vm1156, %v1137, 0.0
    %1245 = vadd.xlane.f32.xlu0 %v1244
    %v1246 = vpop.xlane.xlu0 %1245
    %v1247 = vsel %vm1156, %v1138, 0.0
    %1248 = vadd.xlane.f32.xlu0 %v1247
    %v1249 = vpop.xlane.xlu0 %1248
    %v1250 = vsel %vm1156, %v1139, 0.0
    %1251 = vadd.xlane.f32.xlu0 %v1250
    %v1252 = vpop.xlane.xlu0 %1251
    %v1253 = vsel %vm1156, %v1140, 0.0
    %1254 = vadd.xlane.f32.xlu0 %v1253
    %v1255 = vpop.xlane.xlu0 %1254
    %v1256 = vsel %vm1156, %v1141, 0.0
    %1257 = vadd.xlane.f32.xlu0 %v1256
    %v1258 = vpop.xlane.xlu0 %1257
    %v1259 = vsel %vm1156, %v1142, 0.0
    %1260 = vadd.xlane.f32.xlu0 %v1259
    %v1261 = vpop.xlane.xlu0 %1260
    %v1262 = vsel %vm1156, %v1143, 0.0
    %1263 = vadd.xlane.f32.xlu0 %v1262
    %v1264 = vpop.xlane.xlu0 %1263
    %v1265 = vsel %vm1156, %v1144, 0.0
    %1266 = vadd.xlane.f32.xlu0 %v1265
    %v1267 = vpop.xlane.xlu0 %1266
    %v1268 = vsel %vm1156, %v1145, 0.0
    %1269 = vadd.xlane.f32.xlu0 %v1268
    %v1270 = vpop.xlane.xlu0 %1269
    %v1271 = vsel %vm1156, %v1146, 0.0
    %1272 = vadd.xlane.f32.xlu0 %v1271
    %v1273 = vpop.xlane.xlu0 %1272
    %v1274 = vsel %vm1156, %v1147, 0.0
    %1275 = vadd.xlane.f32.xlu0 %v1274
    %v1276 = vpop.xlane.xlu0 %1275
    %v1277 = vsel %vm1156, %v1148, 0.0
    %1278 = vadd.xlane.f32.xlu0 %v1277
    %v1279 = vpop.xlane.xlu0 %1278
    %v1280 = vsel %vm1156, %v1149, 0.0
    %1281 = vadd.xlane.f32.xlu0 %v1280
    %v1282 = vpop.xlane.xlu0 %1281
    %v1283 = vsel %vm1156, %v1150, 0.0
    %1284 = vadd.xlane.f32.xlu0 %v1283
    %v1285 = vpop.xlane.xlu0 %1284
    %v1286 = vsel %vm1156, %v1151, 0.0
    %1287 = vadd.xlane.f32.xlu0 %v1286
    %v1288 = vpop.xlane.xlu0 %1287
    %v1289 = vsel %vm1156, %v1152, 0.0
    %1290 = vadd.xlane.f32.xlu0 %v1289
    %v1291 = vpop.xlane.xlu0 %1290
    %v1292 = vsel %vm1156, %v1153, 0.0
    %1293 = vadd.xlane.f32.xlu0 %v1292
    %v1294 = vpop.xlane.xlu0 %1293
    %v1295 = vsel %vm1156, %v1154, 0.0
    %1296 = vadd.xlane.f32.xlu0 %v1295
    %v1297 = vpop.xlane.xlu0 %1296
    %v1298 = vsel %vm1156, %v1155, 0.0
    %1299 = vadd.xlane.f32.xlu0 %v1298
    %v1300 = vpop.xlane.xlu0 %1299
    %v1301 = vld [vmem:[#allocation2] sm:$0x1]
    %v1303 = vlaneseq
    %v1304 = vshrl.u32 %v1303, 7
    %v1305 = vsub.s32 0, %v1304
    %v1306 = vrot.slane %v1301, %v1305
    %1307 = vset.pattern.permute.xlu0 0
    %1308 = vperm.xlu0 %1307, %v1306
    %v1309 = vpop.permute.xlu0 %1308
    %v1311 = vadd.f32 %v1159, %v1309
    %v1312 = vadd.f32 %v1162, %v1309
    %v1313 = vadd.f32 %v1165, %v1309
    %v1314 = vadd.f32 %v1168, %v1309
    %v1315 = vadd.f32 %v1171, %v1309
    %v1316 = vadd.f32 %v1174, %v1309
    %v1317 = vadd.f32 %v1177, %v1309
    %v1318 = vadd.f32 %v1180, %v1309
    %v1319 = vadd.f32 %v1183, %v1309
    %v1320 = vadd.f32 %v1186, %v1309
    %v1321 = vadd.f32 %v1189, %v1309
    %v1322 = vadd.f32 %v1192, %v1309
    %v1323 = vadd.f32 %v1195, %v1309
    %v1324 = vadd.f32 %v1198, %v1309
    %v1325 = vadd.f32 %v1201, %v1309
    %v1326 = vadd.f32 %v1204, %v1309
    %v1327 = vadd.f32 %v1207, %v1309
    %v1328 = vadd.f32 %v1210, %v1309
    %v1329 = vadd.f32 %v1213, %v1309
    %v1330 = vadd.f32 %v1216, %v1309
    %v1331 = vadd.f32 %v1219, %v1309
    %v1332 = vadd.f32 %v1222, %v1309
    %v1333 = vadd.f32 %v1225, %v1309
    %v1334 = vadd.f32 %v1228, %v1309
    %v1335 = vadd.f32 %v1231, %v1309
    %v1336 = vadd.f32 %v1234, %v1309
    %v1337 = vadd.f32 %v1237, %v1309
    %v1338 = vadd.f32 %v1240, %v1309
    %v1339 = vadd.f32 %v1243, %v1309
    %v1340 = vadd.f32 %v1246, %v1309
    %v1341 = vadd.f32 %v1249, %v1309
    %v1342 = vadd.f32 %v1252, %v1309
    %v1343 = vadd.f32 %v1255, %v1309
    %v1344 = vadd.f32 %v1258, %v1309
    %v1345 = vadd.f32 %v1261, %v1309
    %v1346 = vadd.f32 %v1264, %v1309
    %v1347 = vadd.f32 %v1267, %v1309
    %v1348 = vadd.f32 %v1270, %v1309
    %v1349 = vadd.f32 %v1273, %v1309
    %v1350 = vadd.f32 %v1276, %v1309
    %v1351 = vadd.f32 %v1279, %v1309
    %v1352 = vadd.f32 %v1282, %v1309
    %v1353 = vadd.f32 %v1285, %v1309
    %v1354 = vadd.f32 %v1288, %v1309
    %v1355 = vadd.f32 %v1291, %v1309
    %v1356 = vadd.f32 %v1294, %v1309
    %v1357 = vadd.f32 %v1297, %v1309
    %v1358 = vadd.f32 %v1300, %v1309
    %v1359 = vxor.u32 %v1311, 2147483648
    %v1360 = vxor.u32 %v1312, 2147483648
    %v1361 = vxor.u32 %v1313, 2147483648
    %v1362 = vxor.u32 %v1314, 2147483648
    %v1363 = vxor.u32 %v1315, 2147483648
    %v1364 = vxor.u32 %v1316, 2147483648
    %v1365 = vxor.u32 %v1317, 2147483648
    %v1366 = vxor.u32 %v1318, 2147483648
    %v1367 = vxor.u32 %v1319, 2147483648
    %v1368 = vxor.u32 %v1320, 2147483648
    %v1369 = vxor.u32 %v1321, 2147483648
    %v1370 = vxor.u32 %v1322, 2147483648
    %v1371 = vxor.u32 %v1323, 2147483648
    %v1372 = vxor.u32 %v1324, 2147483648
    %v1373 = vxor.u32 %v1325, 2147483648
    %v1374 = vxor.u32 %v1326, 2147483648
    %v1375 = vxor.u32 %v1327, 2147483648
    %v1376 = vxor.u32 %v1328, 2147483648
    %v1377 = vxor.u32 %v1329, 2147483648
    %v1378 = vxor.u32 %v1330, 2147483648
    %v1379 = vxor.u32 %v1331, 2147483648
    %v1380 = vxor.u32 %v1332, 2147483648
    %v1381 = vxor.u32 %v1333, 2147483648
    %v1382 = vxor.u32 %v1334, 2147483648
    %v1383 = vxor.u32 %v1335, 2147483648
    %v1384 = vxor.u32 %v1336, 2147483648
    %v1385 = vxor.u32 %v1337, 2147483648
    %v1386 = vxor.u32 %v1338, 2147483648
    %v1387 = vxor.u32 %v1339, 2147483648
    %v1388 = vxor.u32 %v1340, 2147483648
    %v1389 = vxor.u32 %v1341, 2147483648
    %v1390 = vxor.u32 %v1342, 2147483648
    %v1391 = vxor.u32 %v1343, 2147483648
    %v1392 = vxor.u32 %v1344, 2147483648
    %v1393 = vxor.u32 %v1345, 2147483648
    %v1394 = vxor.u32 %v1346, 2147483648
    %v1395 = vxor.u32 %v1347, 2147483648
    %v1396 = vxor.u32 %v1348, 2147483648
    %v1397 = vxor.u32 %v1349, 2147483648
    %v1398 = vxor.u32 %v1350, 2147483648
    %v1399 = vxor.u32 %v1351, 2147483648
    %v1400 = vxor.u32 %v1352, 2147483648
    %v1401 = vxor.u32 %v1353, 2147483648
    %v1402 = vxor.u32 %v1354, 2147483648
    %v1403 = vxor.u32 %v1355, 2147483648
    %v1404 = vxor.u32 %v1356, 2147483648
    %v1405 = vxor.u32 %v1357, 2147483648
    %v1406 = vxor.u32 %v1358, 2147483648
    %v1407 = vmul.f32 %v1359, 1.442695
    %v1408 = vpow.pop %v1407
    %v1409 = vmul.f32 %v1360, 1.442695
    %v1410 = vpow.pop %v1409
    %v1411 = vmul.f32 %v1361, 1.442695
    %v1412 = vpow.pop %v1411
    %v1413 = vmul.f32 %v1362, 1.442695
    %v1414 = vpow.pop %v1413
    %v1415 = vmul.f32 %v1363, 1.442695
    %v1416 = vpow.pop %v1415
    %v1417 = vmul.f32 %v1364, 1.442695
    %v1418 = vpow.pop %v1417
    %v1419 = vmul.f32 %v1365, 1.442695
    %v1420 = vpow.pop %v1419
    %v1421 = vmul.f32 %v1366, 1.442695
    %v1422 = vpow.pop %v1421
    %v1423 = vmul.f32 %v1367, 1.442695
    %v1424 = vpow.pop %v1423
    %v1425 = vmul.f32 %v1368, 1.442695
    %v1426 = vpow.pop %v1425
    %v1427 = vmul.f32 %v1369, 1.442695
    %v1428 = vpow.pop %v1427
    %v1429 = vmul.f32 %v1370, 1.442695
    %v1430 = vpow.pop %v1429
    %v1431 = vmul.f32 %v1371, 1.442695
    %v1432 = vpow.pop %v1431
    %v1433 = vmul.f32 %v1372, 1.442695
    %v1434 = vpow.pop %v1433
    %v1435 = vmul.f32 %v1373, 1.442695
    %v1436 = vpow.pop %v1435
    %v1437 = vmul.f32 %v1374, 1.442695
    %v1438 = vpow.pop %v1437
    %v1439 = vmul.f32 %v1375, 1.442695
    %v1440 = vpow.pop %v1439
    %v1441 = vmul.f32 %v1376, 1.442695
    %v1442 = vpow.pop %v1441
    %v1443 = vmul.f32 %v1377, 1.442695
    %v1444 = vpow.pop %v1443
    %v1445 = vmul.f32 %v1378, 1.442695
    %v1446 = vpow.pop %v1445
    %v1447 = vmul.f32 %v1379, 1.442695
    %v1448 = vpow.pop %v1447
    %v1449 = vmul.f32 %v1380, 1.442695
    %v1450 = vpow.pop %v1449
    %v1451 = vmul.f32 %v1381, 1.442695
    %v1452 = vpow.pop %v1451
    %v1453 = vmul.f32 %v1382, 1.442695
    %v1454 = vpow.pop %v1453
    %v1455 = vmul.f32 %v1383, 1.442695
    %v1456 = vpow.pop %v1455
    %v1457 = vmul.f32 %v1384, 1.442695
    %v1458 = vpow.pop %v1457
    %v1459 = vmul.f32 %v1385, 1.442695
    %v1460 = vpow.pop %v1459
    %v1461 = vmul.f32 %v1386, 1.442695
    %v1462 = vpow.pop %v1461
    %v1463 = vmul.f32 %v1387, 1.442695
    %v1464 = vpow.pop %v1463
    %v1465 = vmul.f32 %v1388, 1.442695
    %v1466 = vpow.pop %v1465
    %v1467 = vmul.f32 %v1389, 1.442695
    %v1468 = vpow.pop %v1467
    %v1469 = vmul.f32 %v1390, 1.442695
    %v1470 = vpow.pop %v1469
    %v1471 = vmul.f32 %v1391, 1.442695
    %v1472 = vpow.pop %v1471
    %v1473 = vmul.f32 %v1392, 1.442695
    %v1474 = vpow.pop %v1473
    %v1475 = vmul.f32 %v1393, 1.442695
    %v1476 = vpow.pop %v1475
    %v1477 = vmul.f32 %v1394, 1.442695
    %v1478 = vpow.pop %v1477
    %v1479 = vmul.f32 %v1395, 1.442695
    %v1480 = vpow.pop %v1479
    %v1481 = vmul.f32 %v1396, 1.442695
    %v1482 = vpow.pop %v1481
    %v1483 = vmul.f32 %v1397, 1.442695
    %v1484 = vpow.pop %v1483
    %v1485 = vmul.f32 %v1398, 1.442695
    %v1486 = vpow.pop %v1485
    %v1487 = vmul.f32 %v1399, 1.442695
    %v1488 = vpow.pop %v1487
    %v1489 = vmul.f32 %v1400, 1.442695
    %v1490 = vpow.pop %v1489
    %v1491 = vmul.f32 %v1401, 1.442695
    %v1492 = vpow.pop %v1491
    %v1493 = vmul.f32 %v1402, 1.442695
    %v1494 = vpow.pop %v1493
    %v1495 = vmul.f32 %v1403, 1.442695
    %v1496 = vpow.pop %v1495
    %v1497 = vmul.f32 %v1404, 1.442695
    %v1498 = vpow.pop %v1497
    %v1499 = vmul.f32 %v1405, 1.442695
    %v1500 = vpow.pop %v1499
    %v1501 = vmul.f32 %v1406, 1.442695
    %v1502 = vpow.pop %v1501
    %v1503 = vadd.f32 %v1408, 1.0
    %v1504 = vadd.f32 %v1410, 1.0
    %v1505 = vadd.f32 %v1412, 1.0
    %v1506 = vadd.f32 %v1414, 1.0
    %v1507 = vadd.f32 %v1416, 1.0
    %v1508 = vadd.f32 %v1418, 1.0
    %v1509 = vadd.f32 %v1420, 1.0
    %v1510 = vadd.f32 %v1422, 1.0
    %v1511 = vadd.f32 %v1424, 1.0
    %v1512 = vadd.f32 %v1426, 1.0
    %v1513 = vadd.f32 %v1428, 1.0
    %v1514 = vadd.f32 %v1430, 1.0
    %v1515 = vadd.f32 %v1432, 1.0
    %v1516 = vadd.f32 %v1434, 1.0
    %v1517 = vadd.f32 %v1436, 1.0
    %v1518 = vadd.f32 %v1438, 1.0
    %v1519 = vadd.f32 %v1440, 1.0
    %v1520 = vadd.f32 %v1442, 1.0
    %v1521 = vadd.f32 %v1444, 1.0
    %v1522 = vadd.f32 %v1446, 1.0
    %v1523 = vadd.f32 %v1448, 1.0
    %v1524 = vadd.f32 %v1450, 1.0
    %v1525 = vadd.f32 %v1452, 1.0
    %v1526 = vadd.f32 %v1454, 1.0
    %v1527 = vadd.f32 %v1456, 1.0
    %v1528 = vadd.f32 %v1458, 1.0
    %v1529 = vadd.f32 %v1460, 1.0
    %v1530 = vadd.f32 %v1462, 1.0
    %v1531 = vadd.f32 %v1464, 1.0
    %v1532 = vadd.f32 %v1466, 1.0
    %v1533 = vadd.f32 %v1468, 1.0
    %v1534 = vadd.f32 %v1470, 1.0
    %v1535 = vadd.f32 %v1472, 1.0
    %v1536 = vadd.f32 %v1474, 1.0
    %v1537 = vadd.f32 %v1476, 1.0
    %v1538 = vadd.f32 %v1478, 1.0
    %v1539 = vadd.f32 %v1480, 1.0
    %v1540 = vadd.f32 %v1482, 1.0
    %v1541 = vadd.f32 %v1484, 1.0
    %v1542 = vadd.f32 %v1486, 1.0
    %v1543 = vadd.f32 %v1488, 1.0
    %v1544 = vadd.f32 %v1490, 1.0
    %v1545 = vadd.f32 %v1492, 1.0
    %v1546 = vadd.f32 %v1494, 1.0
    %v1547 = vadd.f32 %v1496, 1.0
    %v1548 = vadd.f32 %v1498, 1.0
    %v1549 = vadd.f32 %v1500, 1.0
    %v1550 = vadd.f32 %v1502, 1.0
    %v1551 = vrcp.pop %v1503
    %v1552 = vmul.f32 1.0, %v1551
    %v1553 = vrcp.pop %v1504
    %v1554 = vmul.f32 1.0, %v1553
    %v1555 = vrcp.pop %v1505
    %v1556 = vmul.f32 1.0, %v1555
    %v1557 = vrcp.pop %v1506
    %v1558 = vmul.f32 1.0, %v1557
    %v1559 = vrcp.pop %v1507
    %v1560 = vmul.f32 1.0, %v1559
    %v1561 = vrcp.pop %v1508
    %v1562 = vmul.f32 1.0, %v1561
    %v1563 = vrcp.pop %v1509
    %v1564 = vmul.f32 1.0, %v1563
    %v1565 = vrcp.pop %v1510
    %v1566 = vmul.f32 1.0, %v1565
    %v1567 = vrcp.pop %v1511
    %v1568 = vmul.f32 1.0, %v1567
    %v1569 = vrcp.pop %v1512
    %v1570 = vmul.f32 1.0, %v1569
    %v1571 = vrcp.pop %v1513
    %v1572 = vmul.f32 1.0, %v1571
    %v1573 = vrcp.pop %v1514
    %v1574 = vmul.f32 1.0, %v1573
    %v1575 = vrcp.pop %v1515
    %v1576 = vmul.f32 1.0, %v1575
    %v1577 = vrcp.pop %v1516
    %v1578 = vmul.f32 1.0, %v1577
    %v1579 = vrcp.pop %v1517
    %v1580 = vmul.f32 1.0, %v1579
    %v1581 = vrcp.pop %v1518
    %v1582 = vmul.f32 1.0, %v1581
    %v1583 = vrcp.pop %v1519
    %v1584 = vmul.f32 1.0, %v1583
    %v1585 = vrcp.pop %v1520
    %v1586 = vmul.f32 1.0, %v1585
    %v1587 = vrcp.pop %v1521
    %v1588 = vmul.f32 1.0, %v1587
    %v1589 = vrcp.pop %v1522
    %v1590 = vmul.f32 1.0, %v1589
    %v1591 = vrcp.pop %v1523
    %v1592 = vmul.f32 1.0, %v1591
    %v1593 = vrcp.pop %v1524
    %v1594 = vmul.f32 1.0, %v1593
    %v1595 = vrcp.pop %v1525
    %v1596 = vmul.f32 1.0, %v1595
    %v1597 = vrcp.pop %v1526
    %v1598 = vmul.f32 1.0, %v1597
    %v1599 = vrcp.pop %v1527
    %v1600 = vmul.f32 1.0, %v1599
    %v1601 = vrcp.pop %v1528
    %v1602 = vmul.f32 1.0, %v1601
    %v1603 = vrcp.pop %v1529
    %v1604 = vmul.f32 1.0, %v1603
    %v1605 = vrcp.pop %v1530
    %v1606 = vmul.f32 1.0, %v1605
    %v1607 = vrcp.pop %v1531
    %v1608 = vmul.f32 1.0, %v1607
    %v1609 = vrcp.pop %v1532
    %v1610 = vmul.f32 1.0, %v1609
    %v1611 = vrcp.pop %v1533
    %v1612 = vmul.f32 1.0, %v1611
    %v1613 = vrcp.pop %v1534
    %v1614 = vmul.f32 1.0, %v1613
    %v1615 = vrcp.pop %v1535
    %v1616 = vmul.f32 1.0, %v1615
    %v1617 = vrcp.pop %v1536
    %v1618 = vmul.f32 1.0, %v1617
    %v1619 = vrcp.pop %v1537
    %v1620 = vmul.f32 1.0, %v1619
    %v1621 = vrcp.pop %v1538
    %v1622 = vmul.f32 1.0, %v1621
    %v1623 = vrcp.pop %v1539
    %v1624 = vmul.f32 1.0, %v1623
    %v1625 = vrcp.pop %v1540
    %v1626 = vmul.f32 1.0, %v1625
    %v1627 = vrcp.pop %v1541
    %v1628 = vmul.f32 1.0, %v1627
    %v1629 = vrcp.pop %v1542
    %v1630 = vmul.f32 1.0, %v1629
    %v1631 = vrcp.pop %v1543
    %v1632 = vmul.f32 1.0, %v1631
    %v1633 = vrcp.pop %v1544
    %v1634 = vmul.f32 1.0, %v1633
    %v1635 = vrcp.pop %v1545
    %v1636 = vmul.f32 1.0, %v1635
    %v1637 = vrcp.pop %v1546
    %v1638 = vmul.f32 1.0, %v1637
    %v1639 = vrcp.pop %v1547
    %v1640 = vmul.f32 1.0, %v1639
    %v1641 = vrcp.pop %v1548
    %v1642 = vmul.f32 1.0, %v1641
    %v1643 = vrcp.pop %v1549
    %v1644 = vmul.f32 1.0, %v1643
    %v1645 = vrcp.pop %v1550
    %v1646 = vmul.f32 1.0, %v1645
    %v1695 = vlaneseq
    %v1696 = vand.u32 %v1695, 127
    %v1697 = vlaneseq
    %v1698 = vshrl.u32 %v1697, 7
    %v1699 = vsub.s32 %v1696, %v1698
    %v1700 = vrot.slane %v1552, %v1699
    %v1701 = vadd.s32 %v1696, 4294967288
    %v1702 = vlaneseq
    %v1703 = vshrl.u32 %v1702, 7
    %v1704 = vsub.s32 %v1701, %v1703
    %v1705 = vrot.slane %v1554, %v1704
    %vm1706 = vcmask 130112
    %v1707 = vsel %vm1706, %v1705, %v1700
    %v1708 = vadd.s32 %v1696, 4294967280
    %v1709 = vlaneseq
    %v1710 = vshrl.u32 %v1709, 7
    %v1711 = vsub.s32 %v1708, %v1710
    %v1712 = vrot.slane %v1556, %v1711
    %vm1713 = vcmask 195712
    %v1714 = vsel %vm1713, %v1712, %v1707
    %v1715 = vadd.s32 %v1696, 4294967272
    %v1716 = vlaneseq
    %v1717 = vshrl.u32 %v1716, 7
    %v1718 = vsub.s32 %v1715, %v1717
    %v1719 = vrot.slane %v1558, %v1718
    %vm1720 = vcmask 261312
    %v1721 = vsel %vm1720, %v1719, %v1714
    %v1722 = vadd.s32 %v1696, 4294967264
    %v1723 = vlaneseq
    %v1724 = vshrl.u32 %v1723, 7
    %v1725 = vsub.s32 %v1722, %v1724
    %v1726 = vrot.slane %v1560, %v1725
    %vm1727 = vcmask 326912
    %v1728 = vsel %vm1727, %v1726, %v1721
    %v1729 = vadd.s32 %v1696, 4294967256
    %v1730 = vlaneseq
    %v1731 = vshrl.u32 %v1730, 7
    %v1732 = vsub.s32 %v1729, %v1731
    %v1733 = vrot.slane %v1562, %v1732
    %vm1734 = vcmask 392512
    %v1735 = vsel %vm1734, %v1733, %v1728
    %v1736 = vadd.s32 %v1696, 4294967248
    %v1737 = vlaneseq
    %v1738 = vshrl.u32 %v1737, 7
    %v1739 = vsub.s32 %v1736, %v1738
    %v1740 = vrot.slane %v1564, %v1739
    %vm1741 = vcmask 458112
    %v1742 = vsel %vm1741, %v1740, %v1735
    %v1743 = vadd.s32 %v1696, 4294967240
    %v1744 = vlaneseq
    %v1745 = vshrl.u32 %v1744, 7
    %v1746 = vsub.s32 %v1743, %v1745
    %v1747 = vrot.slane %v1566, %v1746
    %vm1748 = vcmask 523712
    %v1749 = vsel %vm1748, %v1747, %v1742
    %v1750 = vadd.s32 %v1696, 4294967232
    %v1751 = vlaneseq
    %v1752 = vshrl.u32 %v1751, 7
    %v1753 = vsub.s32 %v1750, %v1752
    %v1754 = vrot.slane %v1568, %v1753
    %vm1755 = vcmask 589312
    %v1756 = vsel %vm1755, %v1754, %v1749
    %v1757 = vadd.s32 %v1696, 4294967224
    %v1758 = vlaneseq
    %v1759 = vshrl.u32 %v1758, 7
    %v1760 = vsub.s32 %v1757, %v1759
    %v1761 = vrot.slane %v1570, %v1760
    %vm1762 = vcmask 654912
    %v1763 = vsel %vm1762, %v1761, %v1756
    %v1764 = vadd.s32 %v1696, 4294967216
    %v1765 = vlaneseq
    %v1766 = vshrl.u32 %v1765, 7
    %v1767 = vsub.s32 %v1764, %v1766
    %v1768 = vrot.slane %v1572, %v1767
    %vm1769 = vcmask 720512
    %v1770 = vsel %vm1769, %v1768, %v1763
    %v1771 = vadd.s32 %v1696, 4294967208
    %v1772 = vlaneseq
    %v1773 = vshrl.u32 %v1772, 7
    %v1774 = vsub.s32 %v1771, %v1773
    %v1775 = vrot.slane %v1574, %v1774
    %vm1776 = vcmask 786112
    %v1777 = vsel %vm1776, %v1775, %v1770
    %v1778 = vadd.s32 %v1696, 4294967200
    %v1779 = vlaneseq
    %v1780 = vshrl.u32 %v1779, 7
    %v1781 = vsub.s32 %v1778, %v1780
    %v1782 = vrot.slane %v1576, %v1781
    %vm1783 = vcmask 851712
    %v1784 = vsel %vm1783, %v1782, %v1777
    %v1785 = vadd.s32 %v1696, 4294967192
    %v1786 = vlaneseq
    %v1787 = vshrl.u32 %v1786, 7
    %v1788 = vsub.s32 %v1785, %v1787
    %v1789 = vrot.slane %v1578, %v1788
    %vm1790 = vcmask 917312
    %v1791 = vsel %vm1790, %v1789, %v1784
    %v1792 = vadd.s32 %v1696, 4294967184
    %v1793 = vlaneseq
    %v1794 = vshrl.u32 %v1793, 7
    %v1795 = vsub.s32 %v1792, %v1794
    %v1796 = vrot.slane %v1580, %v1795
    %vm1797 = vcmask 982912
    %v1798 = vsel %vm1797, %v1796, %v1791
    %v1799 = vadd.s32 %v1696, 4294967176
    %v1800 = vlaneseq
    %v1801 = vshrl.u32 %v1800, 7
    %v1802 = vsub.s32 %v1799, %v1801
    %v1803 = vrot.slane %v1582, %v1802
    %vm1804 = vcmask 1048512
    %v1805 = vsel %vm1804, %v1803, %v1798
    %v1806 = vlaneseq
    %v1807 = vshrl.u32 %v1806, 7
    %v1808 = vsub.s32 %v1696, %v1807
    %v1809 = vrot.slane %v1584, %v1808
    %v1810 = vlaneseq
    %v1811 = vshrl.u32 %v1810, 7
    %v1812 = vsub.s32 %v1701, %v1811
    %v1813 = vrot.slane %v1586, %v1812
    %v1814 = vsel %vm1706, %v1813, %v1809
    %v1815 = vlaneseq
    %v1816 = vshrl.u32 %v1815, 7
    %v1817 = vsub.s32 %v1708, %v1816
    %v1818 = vrot.slane %v1588, %v1817
    %v1819 = vsel %vm1713, %v1818, %v1814
    %v1820 = vlaneseq
    %v1821 = vshrl.u32 %v1820, 7
    %v1822 = vsub.s32 %v1715, %v1821
    %v1823 = vrot.slane %v1590, %v1822
    %v1824 = vsel %vm1720, %v1823, %v1819
    %v1825 = vlaneseq
    %v1826 = vshrl.u32 %v1825, 7
    %v1827 = vsub.s32 %v1722, %v1826
    %v1828 = vrot.slane %v1592, %v1827
    %v1829 = vsel %vm1727, %v1828, %v1824
    %v1830 = vlaneseq
    %v1831 = vshrl.u32 %v1830, 7
    %v1832 = vsub.s32 %v1729, %v1831
    %v1833 = vrot.slane %v1594, %v1832
    %v1834 = vsel %vm1734, %v1833, %v1829
    %v1835 = vlaneseq
    %v1836 = vshrl.u32 %v1835, 7
    %v1837 = vsub.s32 %v1736, %v1836
    %v1838 = vrot.slane %v1596, %v1837
    %v1839 = vsel %vm1741, %v1838, %v1834
    %v1840 = vlaneseq
    %v1841 = vshrl.u32 %v1840, 7
    %v1842 = vsub.s32 %v1743, %v1841
    %v1843 = vrot.slane %v1598, %v1842
    %v1844 = vsel %vm1748, %v1843, %v1839
    %v1845 = vlaneseq
    %v1846 = vshrl.u32 %v1845, 7
    %v1847 = vsub.s32 %v1750, %v1846
    %v1848 = vrot.slane %v1600, %v1847
    %v1849 = vsel %vm1755, %v1848, %v1844
    %v1850 = vlaneseq
    %v1851 = vshrl.u32 %v1850, 7
    %v1852 = vsub.s32 %v1757, %v1851
    %v1853 = vrot.slane %v1602, %v1852
    %v1854 = vsel %vm1762, %v1853, %v1849
    %v1855 = vlaneseq
    %v1856 = vshrl.u32 %v1855, 7
    %v1857 = vsub.s32 %v1764, %v1856
    %v1858 = vrot.slane %v1604, %v1857
    %v1859 = vsel %vm1769, %v1858, %v1854
    %v1860 = vlaneseq
    %v1861 = vshrl.u32 %v1860, 7
    %v1862 = vsub.s32 %v1771, %v1861
    %v1863 = vrot.slane %v1606, %v1862
    %v1864 = vsel %vm1776, %v1863, %v1859
    %v1865 = vlaneseq
    %v1866 = vshrl.u32 %v1865, 7
    %v1867 = vsub.s32 %v1778, %v1866
    %v1868 = vrot.slane %v1608, %v1867
    %v1869 = vsel %vm1783, %v1868, %v1864
    %v1870 = vlaneseq
    %v1871 = vshrl.u32 %v1870, 7
    %v1872 = vsub.s32 %v1785, %v1871
    %v1873 = vrot.slane %v1610, %v1872
    %v1874 = vsel %vm1790, %v1873, %v1869
    %v1875 = vlaneseq
    %v1876 = vshrl.u32 %v1875, 7
    %v1877 = vsub.s32 %v1792, %v1876
    %v1878 = vrot.slane %v1612, %v1877
    %v1879 = vsel %vm1797, %v1878, %v1874
    %v1880 = vlaneseq
    %v1881 = vshrl.u32 %v1880, 7
    %v1882 = vsub.s32 %v1799, %v1881
    %v1883 = vrot.slane %v1614, %v1882
    %v1884 = vsel %vm1804, %v1883, %v1879
    %v1885 = vlaneseq
    %v1886 = vshrl.u32 %v1885, 7
    %v1887 = vsub.s32 %v1696, %v1886
    %v1888 = vrot.slane %v1616, %v1887
    %v1889 = vlaneseq
    %v1890 = vshrl.u32 %v1889, 7
    %v1891 = vsub.s32 %v1701, %v1890
    %v1892 = vrot.slane %v1618, %v1891
    %v1893 = vsel %vm1706, %v1892, %v1888
    %v1894 = vlaneseq
    %v1895 = vshrl.u32 %v1894, 7
    %v1896 = vsub.s32 %v1708, %v1895
    %v1897 = vrot.slane %v1620, %v1896
    %v1898 = vsel %vm1713, %v1897, %v1893
    %v1899 = vlaneseq
    %v1900 = vshrl.u32 %v1899, 7
    %v1901 = vsub.s32 %v1715, %v1900
    %v1902 = vrot.slane %v1622, %v1901
    %v1903 = vsel %vm1720, %v1902, %v1898
    %v1904 = vlaneseq
    %v1905 = vshrl.u32 %v1904, 7
    %v1906 = vsub.s32 %v1722, %v1905
    %v1907 = vrot.slane %v1624, %v1906
    %v1908 = vsel %vm1727, %v1907, %v1903
    %v1909 = vlaneseq
    %v1910 = vshrl.u32 %v1909, 7
    %v1911 = vsub.s32 %v1729, %v1910
    %v1912 = vrot.slane %v1626, %v1911
    %v1913 = vsel %vm1734, %v1912, %v1908
    %v1914 = vlaneseq
    %v1915 = vshrl.u32 %v1914, 7
    %v1916 = vsub.s32 %v1736, %v1915
    %v1917 = vrot.slane %v1628, %v1916
    %v1918 = vsel %vm1741, %v1917, %v1913
    %v1919 = vlaneseq
    %v1920 = vshrl.u32 %v1919, 7
    %v1921 = vsub.s32 %v1743, %v1920
    %v1922 = vrot.slane %v1630, %v1921
    %v1923 = vsel %vm1748, %v1922, %v1918
    %v1924 = vlaneseq
    %v1925 = vshrl.u32 %v1924, 7
    %v1926 = vsub.s32 %v1750, %v1925
    %v1927 = vrot.slane %v1632, %v1926
    %v1928 = vsel %vm1755, %v1927, %v1923
    %v1929 = vlaneseq
    %v1930 = vshrl.u32 %v1929, 7
    %v1931 = vsub.s32 %v1757, %v1930
    %v1932 = vrot.slane %v1634, %v1931
    %v1933 = vsel %vm1762, %v1932, %v1928
    %v1934 = vlaneseq
    %v1935 = vshrl.u32 %v1934, 7
    %v1936 = vsub.s32 %v1764, %v1935
    %v1937 = vrot.slane %v1636, %v1936
    %v1938 = vsel %vm1769, %v1937, %v1933
    %v1939 = vlaneseq
    %v1940 = vshrl.u32 %v1939, 7
    %v1941 = vsub.s32 %v1771, %v1940
    %v1942 = vrot.slane %v1638, %v1941
    %v1943 = vsel %vm1776, %v1942, %v1938
    %v1944 = vlaneseq
    %v1945 = vshrl.u32 %v1944, 7
    %v1946 = vsub.s32 %v1778, %v1945
    %v1947 = vrot.slane %v1640, %v1946
    %v1948 = vsel %vm1783, %v1947, %v1943
    %v1949 = vlaneseq
    %v1950 = vshrl.u32 %v1949, 7
    %v1951 = vsub.s32 %v1785, %v1950
    %v1952 = vrot.slane %v1642, %v1951
    %v1953 = vsel %vm1790, %v1952, %v1948
    %v1954 = vlaneseq
    %v1955 = vshrl.u32 %v1954, 7
    %v1956 = vsub.s32 %v1792, %v1955
    %v1957 = vrot.slane %v1644, %v1956
    %v1958 = vsel %vm1797, %v1957, %v1953
    %v1959 = vlaneseq
    %v1960 = vshrl.u32 %v1959, 7
    %v1961 = vsub.s32 %v1799, %v1960
    %v1962 = vrot.slane %v1646, %v1961
    %v1963 = vsel %vm1804, %v1962, %v1958
    %vm1964 = vcmask 1041409
    %v1965 = vsel %vm1964, %v1884, %v1805
    %vm1966 = vcmask 1042434
    %v1967 = vsel %vm1966, %v1963, %v1965
    %1969 = vst [vmem:[#allocation3] sm:$0x7] %v1967
    // Predicated region
    $region30: #{tpu_custom_call.1} parent=1 // pred_check
      _
    $region31: #{tpu_custom_call.1} parent=1 // pred_check_branch
      %1971 = sbr.rel (0) target = $region33
    $region32: #{tpu_custom_call.1} parent=1 // pred_region
      %s1973 = ssub.s32 64, 64
      %1974 = vsyncadd [#allocation4], %s1973
      %s1976 = sshll.u32 [#allocation3], 4
      %s1977 = int_to_ptr.vmem [resolvable:$true] %s1976
      %1979 = dma.vmem_to_hbm [thread:$0]  %s1977, 64, %s7, [#allocation4]
    $region33: #{tpu_custom_call.1} parent=1 // pred_fallthru
      _
    // Predicated region
    $region34: #{tpu_custom_call.1} parent=1 // pred_check
      _
    $region35: #{tpu_custom_call.1} parent=1 // pred_check_branch
      %1981 = sbr.rel (0) target = $region37
    $region36: #{tpu_custom_call.1} parent=1 // pred_region
      %1982 = dma.done [#allocation4], 64
    $region37: #{tpu_custom_call.1} parent=1 // pred_fallthru
      _
    %1983 = vsyncpa [#allocation4], 1

</llo_original>
